<compile_context>
chip_gen: v5e
topology: v5e:2x2
jax: 0.10.0
libtpu: 0.0.40
codegen_flags: <defaults>
</compile_context>

<pallas_src>
import numpy as np
import jax
import jax.numpy as jnp
from jax.experimental import pallas as pl
from jax.experimental.pallas import tpu as pltpu

# ---------------- model hyper-parameters (small, deterministic) ----------------
DIM = 32          # model dim
DEPTH = 2         # number of transformer layers
HEADS = 4
DIM_HEAD = 8
FFN_RATIO = 4
HIDDEN = int(DIM * FFN_RATIO)      # 128
INNER = HEADS * DIM_HEAD           # 32
SCALE = DIM_HEAD ** (-0.5)
LN_EPS = 1e-5


# ---------------- in-kernel helpers ----------------
def _layernorm(x, w, b):
    mu = jnp.mean(x, axis=-1, keepdims=True)
    var = jnp.mean((x - mu) ** 2, axis=-1, keepdims=True)
    return (x - mu) * jax.lax.rsqrt(var + LN_EPS) * w + b


def _erf(z):
    # Abramowitz & Stegun 7.1.26 rational approximation (|err| < 1.5e-7); uses only ops
    # with guaranteed Mosaic lowerings (exp, mul, add, where). Keeps GELU in f32 (v5e has
    # no bf16 VPU/EUP path anyway).
    a1, a2, a3, a4, a5 = 0.254829592, -0.284496736, 1.421413741, -1.453152027, 1.061405429
    p = 0.3275911
    az = jnp.abs(z)
    t = 1.0 / (1.0 + p * az)
    poly = ((((a5 * t + a4) * t + a3) * t + a2) * t + a1) * t
    y = 1.0 - poly * jnp.exp(-az * az)
    return jnp.where(z >= 0.0, y, -y)


def _gelu_exact(x):
    return 0.5 * x * (1.0 + _erf(x * (1.0 / np.sqrt(2.0))))


# ---------------- fused single-kernel forward ----------------
def _make_kernel(batch, seqlen):
    """Kernel specialized for static (batch, seqlen)."""
    HN = HEADS * seqlen

    def kernel(x_ref, hm_ref,
               a_ln_w_ref, a_ln_b_ref, w_qkv_ref, m_pre_ref, m_post_ref, wo_ref, bo_ref,
               f_ln_w_ref, f_ln_b_ref, w1_ref, b1_ref, w2_ref, b2_ref,
               o_ref):
        x = x_ref[...]                # (B*N, D), stays resident in VMEM/vregs all layers
        head_mask = hm_ref[...]       # (HEADS*N, INNER) 0/1 head-ownership mask

        for l in range(DEPTH):        # static unroll over layers
            # ---------- talking-heads attention (+ LayerScale folded + residual) ----------
            xn = _layernorm(x, a_ln_w_ref[l], a_ln_b_ref[l])
            qkv = jnp.dot(xn, w_qkv_ref[l], preferred_element_type=jnp.float32)  # (B*N, 3*INNER)
            q = qkv[:, :INNER]                   # SCALE already folded into these columns
            k = qkv[:, INNER:2 * INNER]
            v = qkv[:, 2 * INNER:]

            per_batch = []
            for b in range(batch):               # static, B=2; keys never cross batches
                r0 = b * seqlen
                qb = q[r0:r0 + seqlen]           # (N, INNER)
                kb = k[r0:r0 + seqlen]
                vb = v[r0:r0 + seqlen]

                # heads stacked along sublanes: row h*N+i holds token i restricted to head h
                q_st = jnp.concatenate([qb] * HEADS, axis=0) * head_mask      # (HEADS*N, INNER)
                # scores[h*N+i, j] = sum_d q_h[i,d] * k_h[j,d]   (scale pre-folded)
                s = jax.lax.dot_general(q_st, kb, (((1,), (1,)), ((), ())),
                                        preferred_element_type=jnp.float32)  # (HEADS*N, N)
                # pre-softmax talking-heads mix as one matmul with kron(mix_pre.T, I_N)
                s = jnp.dot(m_pre_ref[l], s, preferred_element_type=jnp.float32)
                s = s - jnp.max(s, axis=-1, keepdims=True)
                e = jnp.exp(s)
                attn = e / jnp.sum(e, axis=-1, keepdims=True)
                # post-softmax talking-heads mix
                attn = jnp.dot(m_post_ref[l], attn, preferred_element_type=jnp.float32)
                # weighted values for all heads at once
                o_st = jnp.dot(attn, vb, preferred_element_type=jnp.float32)  # (HEADS*N, INNER)
                o_st = o_st * head_mask
                # merge heads: sum the HEADS sublane blocks (no lane-axis concatenate)
                ob = o_st[0:seqlen]
                for h in range(1, HEADS):
                    ob = ob + o_st[h * seqlen:(h + 1) * seqlen]               # (N, INNER)
                per_batch.append(ob)

            attn_out = per_batch[0] if batch == 1 else jnp.concatenate(per_batch, axis=0)
            # LayerScale folded into wo/bo -> only residual add left in the epilogue
            x = jnp.dot(attn_out, wo_ref[l], preferred_element_type=jnp.float32) + bo_ref[l] + x

            # ---------- feed-forward (+ LayerScale folded + residual) ----------
            xn = _layernorm(x, f_ln_w_ref[l], f_ln_b_ref[l])
            h1 = jnp.dot(xn, w1_ref[l], preferred_element_type=jnp.float32) + b1_ref[l]
            h1 = _gelu_exact(h1)
            x = jnp.dot(h1, w2_ref[l], preferred_element_type=jnp.float32) + b2_ref[l] + x

        o_ref[...] = x.astype(o_ref.dtype)

    return kernel


def transformer_forward(x, packed):
    B, N, D = x.shape
    kernel = _make_kernel(B, N)
    inputs = [
        x.reshape(B * N, D), packed["head_mask"],
        packed["a_ln_w"], packed["a_ln_b"], packed["w_qkv"],
        packed["m_pre"], packed["m_post"], packed["wo"], packed["bo"],
        packed["f_ln_w"], packed["f_ln_b"], packed["w1"], packed["b1"],
        packed["w2"], packed["b2"],
    ]
    vmem = lambda: pl.BlockSpec(memory_space=pltpu.MemorySpace.VMEM)
    out = pl.pallas_call(
        kernel,
        out_shape=jax.ShapeDtypeStruct((B * N, D), x.dtype),
        in_specs=[vmem() for _ in inputs],
        out_specs=vmem(),
    )(*inputs)
    return out.reshape(B, N, D)


# ---------------- parameter packing (one-time transforms, outside the kernel) ----------------
def pack_params(layers, N):
    eye = jnp.eye(N, dtype=jnp.float32)
    a_ln_w, a_ln_b, w_qkv, m_pre, m_post, wo, bo = [], [], [], [], [], [], []
    f_ln_w, f_ln_b, w1, b1, w2, b2 = [], [], [], [], [], []
    for ap, fp in layers:
        a_ln_w.append(ap["ln_w"].reshape(1, DIM))
        a_ln_b.append(ap["ln_b"].reshape(1, DIM))
        # fused QKV, with the attention scale folded into the Q columns
        w_qkv.append(jnp.concatenate([ap["wq"] * SCALE, ap["wk"], ap["wv"]], axis=1))
        # talking-heads mixes as (HEADS*N, HEADS*N) kron matrices (heads stacked on sublanes)
        m_pre.append(jnp.kron(ap["mix_pre"].T, eye))
        m_post.append(jnp.kron(ap["mix_post"].T, eye))
        ls_a = ap["ls"].reshape(1, DIM)
        wo.append(ap["wo"] * ls_a)                       # LayerScale folded (column scale)
        bo.append(ap["bo"].reshape(1, DIM) * ls_a)
        f_ln_w.append(fp["ln_w"].reshape(1, DIM))
        f_ln_b.append(fp["ln_b"].reshape(1, DIM))
        w1.append(fp["w1"])
        b1.append(fp["b1"].reshape(1, HIDDEN))
        ls_f = fp["ls"].reshape(1, DIM)
        w2.append(fp["w2"] * ls_f)                       # LayerScale folded
        b2.append(fp["b2"].reshape(1, DIM) * ls_f)
    rows = jnp.arange(HEADS * N) // N                    # head owning each stacked row
    cols = jnp.arange(INNER) // DIM_HEAD                 # head owning each feature column
    head_mask = (rows[:, None] == cols[None, :]).astype(jnp.float32)
    pk = lambda lst: jnp.stack(lst, axis=0)
    return dict(
        head_mask=head_mask,
        a_ln_w=pk(a_ln_w), a_ln_b=pk(a_ln_b), w_qkv=pk(w_qkv),
        m_pre=pk(m_pre), m_post=pk(m_post), wo=pk(wo), bo=pk(bo),
        f_ln_w=pk(f_ln_w), f_ln_b=pk(f_ln_b),
        w1=pk(w1), b1=pk(b1), w2=pk(w2), b2=pk(b2),
    )


# ---------------- deterministic parameter init (shapes from the PyTorch __init__) ----------------
def init_params(key):
    layers = []
    for ind in range(DEPTH):
        d = ind + 1
        init_eps = 0.1 if d <= 18 else (1e-5 if d <= 24 else 1e-6)
        key, *ks = jax.random.split(key, 12)
        attn_p = dict(
            ln_w=jnp.ones((DIM,), jnp.float32),
            ln_b=jnp.zeros((DIM,), jnp.float32),
            wq=0.05 * jax.random.normal(ks[0], (DIM, INNER), jnp.float32),
            wk=0.05 * jax.random.normal(ks[1], (DIM, INNER), jnp.float32),   # first half of to_kv
            wv=0.05 * jax.random.normal(ks[2], (DIM, INNER), jnp.float32),   # second half of to_kv
            wo=0.05 * jax.random.normal(ks[3], (INNER, DIM), jnp.float32),
            bo=0.01 * jax.random.normal(ks[4], (DIM,), jnp.float32),
            mix_pre=jax.random.normal(ks[5], (HEADS, HEADS), jnp.float32),
            mix_post=jax.random.normal(ks[6], (HEADS, HEADS), jnp.float32),
            ls=jnp.full((DIM,), init_eps, jnp.float32),
        )
        ff_p = dict(
            ln_w=jnp.ones((DIM,), jnp.float32),
            ln_b=jnp.zeros((DIM,), jnp.float32),
            w1=0.05 * jax.random.normal(ks[7], (DIM, HIDDEN), jnp.float32),
            b1=0.01 * jax.random.normal(ks[8], (HIDDEN,), jnp.float32),
            w2=0.05 * jax.random.normal(ks[9], (HIDDEN, DIM), jnp.float32),
            b2=0.01 * jax.random.normal(ks[10], (DIM,), jnp.float32),
            ls=jnp.full((DIM,), init_eps, jnp.float32),
        )
        layers.append((attn_p, ff_p))
    return layers


# ---------------- pure-JAX reference (uses the ORIGINAL, un-folded parameters) ----------------
def _ref_ln(x, w, b):
    mu = jnp.mean(x, axis=-1, keepdims=True)
    var = jnp.mean((x - mu) ** 2, axis=-1, keepdims=True)
    return (x - mu) / jnp.sqrt(var + LN_EPS) * w + b


def _ref_attn(x, p):
    B, N, D = x.shape
    xn = _ref_ln(x, p["ln_w"], p["ln_b"])
    q, k, v = xn @ p["wq"], xn @ p["wk"], xn @ p["wv"]
    split = lambda t: t.reshape(B, N, HEADS, DIM_HEAD).transpose(0, 2, 1, 3)
    q, k, v = split(q), split(k), split(v)
    dots = jnp.einsum("bhid,bhjd->bhij", q, k) * SCALE
    dots = jnp.einsum("bhij,hg->bgij", dots, p["mix_pre"])
    attn = jax.nn.softmax(dots, axis=-1)
    attn = jnp.einsum("bhij,hg->bgij", attn, p["mix_post"])
    out = jnp.einsum("bhij,bhjd->bhid", attn, v)
    out = out.transpose(0, 2, 1, 3).reshape(B, N, INNER)
    out = out @ p["wo"] + p["bo"]
    return out * p["ls"] + x


def _ref_ff(x, p):
    xn = _ref_ln(x, p["ln_w"], p["ln_b"])
    h = jax.nn.gelu(xn @ p["w1"] + p["b1"], approximate=False)
    out = h @ p["w2"] + p["b2"]
    return out * p["ls"] + x


def ref_forward(x, layers):
    for attn_p, ff_p in layers:
        x = _ref_attn(x, attn_p)
        x = _ref_ff(x, ff_p)
    return x


# ---------------- main ----------------
if __name__ == "__main__":
    key = jax.random.PRNGKey(0)
    kx, kp = jax.random.split(key)
    B, N = 2, 8
    x = jax.random.normal(kx, (B, N, DIM), jnp.float32)
    layers = init_params(kp)
    packed = pack_params(layers, N)

    y = transformer_forward(x, packed)
    y = jax.block_until_ready(y)

    y_ref = ref_forward(x, layers)
    if not np.allclose(np.asarray(y), np.asarray(y_ref), atol=2e-3, rtol=2e-3):
        raise AssertionError("Pallas kernel output does not match pure-JAX reference")

    print("KERNEL_OK")
</pallas_src>

<mosaic_0001>
module attributes {stable_mosaic.version = 11 : i64} {
  func.func @kernel(%arg0: memref<16x32xf32, #tpu.memory_space<vmem>>, %arg1: memref<32x32xf32, #tpu.memory_space<vmem>>, %arg2: memref<2x1x32xf32, #tpu.memory_space<vmem>>, %arg3: memref<2x1x32xf32, #tpu.memory_space<vmem>>, %arg4: memref<2x32x96xf32, #tpu.memory_space<vmem>>, %arg5: memref<2x32x32xf32, #tpu.memory_space<vmem>>, %arg6: memref<2x32x32xf32, #tpu.memory_space<vmem>>, %arg7: memref<2x32x32xf32, #tpu.memory_space<vmem>>, %arg8: memref<2x1x32xf32, #tpu.memory_space<vmem>>, %arg9: memref<2x1x32xf32, #tpu.memory_space<vmem>>, %arg10: memref<2x1x32xf32, #tpu.memory_space<vmem>>, %arg11: memref<2x32x128xf32, #tpu.memory_space<vmem>>, %arg12: memref<2x1x128xf32, #tpu.memory_space<vmem>>, %arg13: memref<2x128x32xf32, #tpu.memory_space<vmem>>, %arg14: memref<2x1x32xf32, #tpu.memory_space<vmem>>, %arg15: memref<16x32xf32, #tpu.memory_space<vmem>>) attributes {dimension_semantics = [], scalar_prefetch = 0 : i64, scratch_operands = 0 : i64, tpu.core_type = #tpu.core_type<tc>} {
    %c0 = arith.constant 0 : index
    %c0_0 = arith.constant 0 : index
    %0 = vector.load %arg0[%c0, %c0_0] : memref<16x32xf32, #tpu.memory_space<vmem>>, vector<16x32xf32>
    %c0_1 = arith.constant 0 : index
    %c0_2 = arith.constant 0 : index
    %1 = vector.load %arg1[%c0_1, %c0_2] : memref<32x32xf32, #tpu.memory_space<vmem>>, vector<32x32xf32>
    %c0_3 = arith.constant 0 : index
    %c0_4 = arith.constant 0 : index
    %c0_5 = arith.constant 0 : index
    %2 = vector.load %arg2[%c0_3, %c0_4, %c0_5] : memref<2x1x32xf32, #tpu.memory_space<vmem>>, vector<1x1x32xf32>
    %3 = vector.shape_cast %2 : vector<1x1x32xf32> to vector<1x32xf32>
    %c0_6 = arith.constant 0 : index
    %c0_7 = arith.constant 0 : index
    %c0_8 = arith.constant 0 : index
    %4 = vector.load %arg3[%c0_6, %c0_7, %c0_8] : memref<2x1x32xf32, #tpu.memory_space<vmem>>, vector<1x1x32xf32>
    %5 = vector.shape_cast %4 : vector<1x1x32xf32> to vector<1x32xf32>
    %cst = arith.constant dense<0.000000e+00> : vector<16xf32>
    %6 = vector.multi_reduction <add>, %0, %cst [1] : vector<16x32xf32> to vector<16xf32>
    %7 = vector.shape_cast %6 : vector<16xf32> to vector<16x1xf32>
    %cst_9 = arith.constant 3.200000e+01 : f32
    %8 = vector.broadcast %cst_9 : f32 to vector<16x1xf32>
    %9 = arith.divf %7, %8 : vector<16x1xf32>
    %10 = vector.broadcast %9 : vector<16x1xf32> to vector<16x32xf32>
    %11 = arith.subf %0, %10 : vector<16x32xf32>
    %12 = arith.mulf %11, %11 : vector<16x32xf32>
    %cst_10 = arith.constant dense<0.000000e+00> : vector<16xf32>
    %13 = vector.multi_reduction <add>, %12, %cst_10 [1] : vector<16x32xf32> to vector<16xf32>
    %14 = vector.shape_cast %13 : vector<16xf32> to vector<16x1xf32>
    %cst_11 = arith.constant 3.200000e+01 : f32
    %15 = vector.broadcast %cst_11 : f32 to vector<16x1xf32>
    %16 = arith.divf %14, %15 : vector<16x1xf32>
    %17 = vector.broadcast %9 : vector<16x1xf32> to vector<16x32xf32>
    %18 = arith.subf %0, %17 : vector<16x32xf32>
    %cst_12 = arith.constant 9.99999974E-6 : f32
    %19 = vector.broadcast %cst_12 : f32 to vector<16x1xf32>
    %20 = arith.addf %16, %19 : vector<16x1xf32>
    %21 = math.rsqrt %20 : vector<16x1xf32>
    %22 = vector.broadcast %21 : vector<16x1xf32> to vector<16x32xf32>
    %23 = arith.mulf %18, %22 : vector<16x32xf32>
    %24 = vector.broadcast %3 : vector<1x32xf32> to vector<16x32xf32>
    %25 = arith.mulf %23, %24 : vector<16x32xf32>
    %26 = vector.broadcast %5 : vector<1x32xf32> to vector<16x32xf32>
    %27 = arith.addf %25, %26 : vector<16x32xf32>
    %c0_13 = arith.constant 0 : index
    %c0_14 = arith.constant 0 : index
    %c0_15 = arith.constant 0 : index
    %28 = vector.load %arg4[%c0_13, %c0_14, %c0_15] : memref<2x32x96xf32, #tpu.memory_space<vmem>>, vector<1x32x96xf32>
    %29 = vector.shape_cast %28 : vector<1x32x96xf32> to vector<32x96xf32>
    %cst_16 = arith.constant dense<0.000000e+00> : vector<16x96xf32>
    %30 = tpu.matmul %27, %29, %cst_16 {dimension_numbers = #tpu.dot_dimension_numbers<[1], [0], [0], [1], [0, 0, 1, 1], [], []>} : vector<16x32xf32>, vector<32x96xf32>, vector<16x96xf32> -> vector<16x96xf32>
    %31 = vector.extract_strided_slice %30 {offsets = [0, 0], sizes = [16, 32], strides = [1, 1]} : vector<16x96xf32> to vector<16x32xf32>
    %32 = vector.extract_strided_slice %30 {offsets = [0, 32], sizes = [16, 32], strides = [1, 1]} : vector<16x96xf32> to vector<16x32xf32>
    %33 = vector.extract_strided_slice %30 {offsets = [0, 64], sizes = [16, 32], strides = [1, 1]} : vector<16x96xf32> to vector<16x32xf32>
    %34 = vector.extract_strided_slice %31 {offsets = [0, 0], sizes = [8, 32], strides = [1, 1]} : vector<16x32xf32> to vector<8x32xf32>
    %35 = vector.extract_strided_slice %32 {offsets = [0, 0], sizes = [8, 32], strides = [1, 1]} : vector<16x32xf32> to vector<8x32xf32>
    %36 = vector.extract_strided_slice %33 {offsets = [0, 0], sizes = [8, 32], strides = [1, 1]} : vector<16x32xf32> to vector<8x32xf32>
    %37 = tpu.concatenate %34, %34, %34, %34 in 0 : vector<8x32xf32>, vector<8x32xf32>, vector<8x32xf32>, vector<8x32xf32> -> vector<32x32xf32>
    %38 = arith.mulf %37, %1 : vector<32x32xf32>
    %cst_17 = arith.constant dense<0.000000e+00> : vector<32x8xf32>
    %39 = tpu.matmul %38, %35, %cst_17 {dimension_numbers = #tpu.dot_dimension_numbers<[1], [1], [0], [0], [0, 0, 1, 0], [], []>} : vector<32x32xf32>, vector<8x32xf32>, vector<32x8xf32> -> vector<32x8xf32>
    %c0_18 = arith.constant 0 : index
    %c0_19 = arith.constant 0 : index
    %c0_20 = arith.constant 0 : index
    %40 = vector.load %arg5[%c0_18, %c0_19, %c0_20] : memref<2x32x32xf32, #tpu.memory_space<vmem>>, vector<1x32x32xf32>
    %41 = vector.shape_cast %40 : vector<1x32x32xf32> to vector<32x32xf32>
    %cst_21 = arith.constant dense<0.000000e+00> : vector<32x8xf32>
    %42 = tpu.matmul %41, %39, %cst_21 {dimension_numbers = #tpu.dot_dimension_numbers<[1], [0], [0], [1], [0, 0, 1, 1], [], []>} : vector<32x32xf32>, vector<32x8xf32>, vector<32x8xf32> -> vector<32x8xf32>
    %cst_22 = arith.constant dense<0xFF800000> : vector<32xf32>
    %43 = vector.multi_reduction <maximumf>, %42, %cst_22 [1] : vector<32x8xf32> to vector<32xf32>
    %44 = vector.shape_cast %43 : vector<32xf32> to vector<32x1xf32>
    %45 = vector.broadcast %44 : vector<32x1xf32> to vector<32x8xf32>
    %46 = arith.subf %42, %45 : vector<32x8xf32>
    %47 = math.exp %46 : vector<32x8xf32>
    %cst_23 = arith.constant dense<0.000000e+00> : vector<32xf32>
    %48 = vector.multi_reduction <add>, %47, %cst_23 [1] : vector<32x8xf32> to vector<32xf32>
    %49 = vector.shape_cast %48 : vector<32xf32> to vector<32x1xf32>
    %50 = vector.broadcast %49 : vector<32x1xf32> to vector<32x8xf32>
    %51 = arith.divf %47, %50 : vector<32x8xf32>
    %c0_24 = arith.constant 0 : index
    %c0_25 = arith.constant 0 : index
    %c0_26 = arith.constant 0 : index
    %52 = vector.load %arg6[%c0_24, %c0_25, %c0_26] : memref<2x32x32xf32, #tpu.memory_space<vmem>>, vector<1x32x32xf32>
    %53 = vector.shape_cast %52 : vector<1x32x32xf32> to vector<32x32xf32>
    %cst_27 = arith.constant dense<0.000000e+00> : vector<32x8xf32>
    %54 = tpu.matmul %53, %51, %cst_27 {dimension_numbers = #tpu.dot_dimension_numbers<[1], [0], [0], [1], [0, 0, 1, 1], [], []>} : vector<32x32xf32>, vector<32x8xf32>, vector<32x8xf32> -> vector<32x8xf32>
    %cst_28 = arith.constant dense<0.000000e+00> : vector<32x32xf32>
    %55 = tpu.matmul %54, %36, %cst_28 {dimension_numbers = #tpu.dot_dimension_numbers<[1], [0], [0], [1], [0, 0, 1, 1], [], []>} : vector<32x8xf32>, vector<8x32xf32>, vector<32x32xf32> -> vector<32x32xf32>
    %56 = arith.mulf %55, %1 : vector<32x32xf32>
    %57 = vector.extract_strided_slice %56 {offsets = [0, 0], sizes = [8, 32], strides = [1, 1]} : vector<32x32xf32> to vector<8x32xf32>
    %58 = vector.extract_strided_slice %56 {offsets = [8, 0], sizes = [8, 32], strides = [1, 1]} : vector<32x32xf32> to vector<8x32xf32>
    %59 = arith.addf %57, %58 : vector<8x32xf32>
    %60 = vector.extract_strided_slice %56 {offsets = [16, 0], sizes = [8, 32], strides = [1, 1]} : vector<32x32xf32> to vector<8x32xf32>
    %61 = arith.addf %59, %60 : vector<8x32xf32>
    %62 = vector.extract_strided_slice %56 {offsets = [24, 0], sizes = [8, 32], strides = [1, 1]} : vector<32x32xf32> to vector<8x32xf32>
    %63 = arith.addf %61, %62 : vector<8x32xf32>
    %64 = vector.extract_strided_slice %31 {offsets = [8, 0], sizes = [8, 32], strides = [1, 1]} : vector<16x32xf32> to vector<8x32xf32>
    %65 = vector.extract_strided_slice %32 {offsets = [8, 0], sizes = [8, 32], strides = [1, 1]} : vector<16x32xf32> to vector<8x32xf32>
    %66 = vector.extract_strided_slice %33 {offsets = [8, 0], sizes = [8, 32], strides = [1, 1]} : vector<16x32xf32> to vector<8x32xf32>
    %67 = tpu.concatenate %64, %64, %64, %64 in 0 : vector<8x32xf32>, vector<8x32xf32>, vector<8x32xf32>, vector<8x32xf32> -> vector<32x32xf32>
    %68 = arith.mulf %67, %1 : vector<32x32xf32>
    %cst_29 = arith.constant dense<0.000000e+00> : vector<32x8xf32>
    %69 = tpu.matmul %68, %65, %cst_29 {dimension_numbers = #tpu.dot_dimension_numbers<[1], [1], [0], [0], [0, 0, 1, 0], [], []>} : vector<32x32xf32>, vector<8x32xf32>, vector<32x8xf32> -> vector<32x8xf32>
    %c0_30 = arith.constant 0 : index
    %c0_31 = arith.constant 0 : index
    %c0_32 = arith.constant 0 : index
    %70 = vector.load %arg5[%c0_30, %c0_31, %c0_32] : memref<2x32x32xf32, #tpu.memory_space<vmem>>, vector<1x32x32xf32>
    %71 = vector.shape_cast %70 : vector<1x32x32xf32> to vector<32x32xf32>
    %cst_33 = arith.constant dense<0.000000e+00> : vector<32x8xf32>
    %72 = tpu.matmul %71, %69, %cst_33 {dimension_numbers = #tpu.dot_dimension_numbers<[1], [0], [0], [1], [0, 0, 1, 1], [], []>} : vector<32x32xf32>, vector<32x8xf32>, vector<32x8xf32> -> vector<32x8xf32>
    %cst_34 = arith.constant dense<0xFF800000> : vector<32xf32>
    %73 = vector.multi_reduction <maximumf>, %72, %cst_34 [1] : vector<32x8xf32> to vector<32xf32>
    %74 = vector.shape_cast %73 : vector<32xf32> to vector<32x1xf32>
    %75 = vector.broadcast %74 : vector<32x1xf32> to vector<32x8xf32>
    %76 = arith.subf %72, %75 : vector<32x8xf32>
    %77 = math.exp %76 : vector<32x8xf32>
    %cst_35 = arith.constant dense<0.000000e+00> : vector<32xf32>
    %78 = vector.multi_reduction <add>, %77, %cst_35 [1] : vector<32x8xf32> to vector<32xf32>
    %79 = vector.shape_cast %78 : vector<32xf32> to vector<32x1xf32>
    %80 = vector.broadcast %79 : vector<32x1xf32> to vector<32x8xf32>
    %81 = arith.divf %77, %80 : vector<32x8xf32>
    %c0_36 = arith.constant 0 : index
    %c0_37 = arith.constant 0 : index
    %c0_38 = arith.constant 0 : index
    %82 = vector.load %arg6[%c0_36, %c0_37, %c0_38] : memref<2x32x32xf32, #tpu.memory_space<vmem>>, vector<1x32x32xf32>
    %83 = vector.shape_cast %82 : vector<1x32x32xf32> to vector<32x32xf32>
    %cst_39 = arith.constant dense<0.000000e+00> : vector<32x8xf32>
    %84 = tpu.matmul %83, %81, %cst_39 {dimension_numbers = #tpu.dot_dimension_numbers<[1], [0], [0], [1], [0, 0, 1, 1], [], []>} : vector<32x32xf32>, vector<32x8xf32>, vector<32x8xf32> -> vector<32x8xf32>
    %cst_40 = arith.constant dense<0.000000e+00> : vector<32x32xf32>
    %85 = tpu.matmul %84, %66, %cst_40 {dimension_numbers = #tpu.dot_dimension_numbers<[1], [0], [0], [1], [0, 0, 1, 1], [], []>} : vector<32x8xf32>, vector<8x32xf32>, vector<32x32xf32> -> vector<32x32xf32>
    %86 = arith.mulf %85, %1 : vector<32x32xf32>
    %87 = vector.extract_strided_slice %86 {offsets = [0, 0], sizes = [8, 32], strides = [1, 1]} : vector<32x32xf32> to vector<8x32xf32>
    %88 = vector.extract_strided_slice %86 {offsets = [8, 0], sizes = [8, 32], strides = [1, 1]} : vector<32x32xf32> to vector<8x32xf32>
    %89 = arith.addf %87, %88 : vector<8x32xf32>
    %90 = vector.extract_strided_slice %86 {offsets = [16, 0], sizes = [8, 32], strides = [1, 1]} : vector<32x32xf32> to vector<8x32xf32>
    %91 = arith.addf %89, %90 : vector<8x32xf32>
    %92 = vector.extract_strided_slice %86 {offsets = [24, 0], sizes = [8, 32], strides = [1, 1]} : vector<32x32xf32> to vector<8x32xf32>
    %93 = arith.addf %91, %92 : vector<8x32xf32>
    %94 = tpu.concatenate %63, %93 in 0 : vector<8x32xf32>, vector<8x32xf32> -> vector<16x32xf32>
    %c0_41 = arith.constant 0 : index
    %c0_42 = arith.constant 0 : index
    %c0_43 = arith.constant 0 : index
    %95 = vector.load %arg7[%c0_41, %c0_42, %c0_43] : memref<2x32x32xf32, #tpu.memory_space<vmem>>, vector<1x32x32xf32>
    %96 = vector.shape_cast %95 : vector<1x32x32xf32> to vector<32x32xf32>
    %cst_44 = arith.constant dense<0.000000e+00> : vector<16x32xf32>
    %97 = tpu.matmul %94, %96, %cst_44 {dimension_numbers = #tpu.dot_dimension_numbers<[1], [0], [0], [1], [0, 0, 1, 1], [], []>} : vector<16x32xf32>, vector<32x32xf32>, vector<16x32xf32> -> vector<16x32xf32>
    %c0_45 = arith.constant 0 : index
    %c0_46 = arith.constant 0 : index
    %c0_47 = arith.constant 0 : index
    %98 = vector.load %arg8[%c0_45, %c0_46, %c0_47] : memref<2x1x32xf32, #tpu.memory_space<vmem>>, vector<1x1x32xf32>
    %99 = vector.shape_cast %98 : vector<1x1x32xf32> to vector<1x32xf32>
    %100 = vector.broadcast %99 : vector<1x32xf32> to vector<16x32xf32>
    %101 = arith.addf %97, %100 : vector<16x32xf32>
    %102 = arith.addf %101, %0 : vector<16x32xf32>
    %c0_48 = arith.constant 0 : index
    %c0_49 = arith.constant 0 : index
    %c0_50 = arith.constant 0 : index
    %103 = vector.load %arg9[%c0_48, %c0_49, %c0_50] : memref<2x1x32xf32, #tpu.memory_space<vmem>>, vector<1x1x32xf32>
    %104 = vector.shape_cast %103 : vector<1x1x32xf32> to vector<1x32xf32>
    %c0_51 = arith.constant 0 : index
    %c0_52 = arith.constant 0 : index
    %c0_53 = arith.constant 0 : index
    %105 = vector.load %arg10[%c0_51, %c0_52, %c0_53] : memref<2x1x32xf32, #tpu.memory_space<vmem>>, vector<1x1x32xf32>
    %106 = vector.shape_cast %105 : vector<1x1x32xf32> to vector<1x32xf32>
    %cst_54 = arith.constant dense<0.000000e+00> : vector<16xf32>
    %107 = vector.multi_reduction <add>, %102, %cst_54 [1] : vector<16x32xf32> to vector<16xf32>
    %108 = vector.shape_cast %107 : vector<16xf32> to vector<16x1xf32>
    %cst_55 = arith.constant 3.200000e+01 : f32
    %109 = vector.broadcast %cst_55 : f32 to vector<16x1xf32>
    %110 = arith.divf %108, %109 : vector<16x1xf32>
    %111 = vector.broadcast %110 : vector<16x1xf32> to vector<16x32xf32>
    %112 = arith.subf %102, %111 : vector<16x32xf32>
    %113 = arith.mulf %112, %112 : vector<16x32xf32>
    %cst_56 = arith.constant dense<0.000000e+00> : vector<16xf32>
    %114 = vector.multi_reduction <add>, %113, %cst_56 [1] : vector<16x32xf32> to vector<16xf32>
    %115 = vector.shape_cast %114 : vector<16xf32> to vector<16x1xf32>
    %cst_57 = arith.constant 3.200000e+01 : f32
    %116 = vector.broadcast %cst_57 : f32 to vector<16x1xf32>
    %117 = arith.divf %115, %116 : vector<16x1xf32>
    %118 = vector.broadcast %110 : vector<16x1xf32> to vector<16x32xf32>
    %119 = arith.subf %102, %118 : vector<16x32xf32>
    %cst_58 = arith.constant 9.99999974E-6 : f32
    %120 = vector.broadcast %cst_58 : f32 to vector<16x1xf32>
    %121 = arith.addf %117, %120 : vector<16x1xf32>
    %122 = math.rsqrt %121 : vector<16x1xf32>
    %123 = vector.broadcast %122 : vector<16x1xf32> to vector<16x32xf32>
    %124 = arith.mulf %119, %123 : vector<16x32xf32>
    %125 = vector.broadcast %104 : vector<1x32xf32> to vector<16x32xf32>
    %126 = arith.mulf %124, %125 : vector<16x32xf32>
    %127 = vector.broadcast %106 : vector<1x32xf32> to vector<16x32xf32>
    %128 = arith.addf %126, %127 : vector<16x32xf32>
    %c0_59 = arith.constant 0 : index
    %c0_60 = arith.constant 0 : index
    %c0_61 = arith.constant 0 : index
    %129 = vector.load %arg11[%c0_59, %c0_60, %c0_61] : memref<2x32x128xf32, #tpu.memory_space<vmem>>, vector<1x32x128xf32>
    %130 = vector.shape_cast %129 : vector<1x32x128xf32> to vector<32x128xf32>
    %cst_62 = arith.constant dense<0.000000e+00> : vector<16x128xf32>
    %131 = tpu.matmul %128, %130, %cst_62 {dimension_numbers = #tpu.dot_dimension_numbers<[1], [0], [0], [1], [0, 0, 1, 1], [], []>} : vector<16x32xf32>, vector<32x128xf32>, vector<16x128xf32> -> vector<16x128xf32>
    %c0_63 = arith.constant 0 : index
    %c0_64 = arith.constant 0 : index
    %c0_65 = arith.constant 0 : index
    %132 = vector.load %arg12[%c0_63, %c0_64, %c0_65] : memref<2x1x128xf32, #tpu.memory_space<vmem>>, vector<1x1x128xf32>
    %133 = vector.shape_cast %132 : vector<1x1x128xf32> to vector<1x128xf32>
    %134 = vector.broadcast %133 : vector<1x128xf32> to vector<16x128xf32>
    %135 = arith.addf %131, %134 : vector<16x128xf32>
    %cst_66 = arith.constant 5.000000e-01 : f32
    %136 = vector.broadcast %cst_66 : f32 to vector<16x128xf32>
    %137 = arith.mulf %136, %135 : vector<16x128xf32>
    %cst_67 = arith.constant 0.707106769 : f32
    %138 = vector.broadcast %cst_67 : f32 to vector<16x128xf32>
    %139 = arith.mulf %135, %138 : vector<16x128xf32>
    %140 = math.absf %139 : vector<16x128xf32>
    %cst_68 = arith.constant 0.327591091 : f32
    %141 = vector.broadcast %cst_68 : f32 to vector<16x128xf32>
    %142 = arith.mulf %141, %140 : vector<16x128xf32>
    %cst_69 = arith.constant 1.000000e+00 : f32
    %143 = vector.broadcast %cst_69 : f32 to vector<16x128xf32>
    %144 = arith.addf %143, %142 : vector<16x128xf32>
    %cst_70 = arith.constant 1.000000e+00 : f32
    %145 = vector.broadcast %cst_70 : f32 to vector<16x128xf32>
    %146 = arith.divf %145, %144 : vector<16x128xf32>
    %cst_71 = arith.constant 1.06140542 : f32
    %147 = vector.broadcast %cst_71 : f32 to vector<16x128xf32>
    %148 = arith.mulf %147, %146 : vector<16x128xf32>
    %cst_72 = arith.constant -1.45315206 : f32
    %149 = vector.broadcast %cst_72 : f32 to vector<16x128xf32>
    %150 = arith.addf %148, %149 : vector<16x128xf32>
    %151 = arith.mulf %150, %146 : vector<16x128xf32>
    %cst_73 = arith.constant 1.42141378 : f32
    %152 = vector.broadcast %cst_73 : f32 to vector<16x128xf32>
    %153 = arith.addf %151, %152 : vector<16x128xf32>
    %154 = arith.mulf %153, %146 : vector<16x128xf32>
    %cst_74 = arith.constant -0.284496725 : f32
    %155 = vector.broadcast %cst_74 : f32 to vector<16x128xf32>
    %156 = arith.addf %154, %155 : vector<16x128xf32>
    %157 = arith.mulf %156, %146 : vector<16x128xf32>
    %cst_75 = arith.constant 0.254829586 : f32
    %158 = vector.broadcast %cst_75 : f32 to vector<16x128xf32>
    %159 = arith.addf %157, %158 : vector<16x128xf32>
    %160 = arith.mulf %159, %146 : vector<16x128xf32>
    %cst_76 = arith.constant 0.000000e+00 : f32
    %161 = vector.broadcast %cst_76 : f32 to vector<16x128xf32>
    %162 = arith.subf %161, %140 : vector<16x128xf32>
    %163 = arith.mulf %162, %140 : vector<16x128xf32>
    %164 = math.exp %163 : vector<16x128xf32>
    %165 = arith.mulf %160, %164 : vector<16x128xf32>
    %cst_77 = arith.constant 1.000000e+00 : f32
    %166 = vector.broadcast %cst_77 : f32 to vector<16x128xf32>
    %167 = arith.subf %166, %165 : vector<16x128xf32>
    %cst_78 = arith.constant 0.000000e+00 : f32
    %168 = vector.broadcast %cst_78 : f32 to vector<16x128xf32>
    %169 = arith.cmpf oge, %139, %168 : vector<16x128xf32>
    %cst_79 = arith.constant 0.000000e+00 : f32
    %170 = vector.broadcast %cst_79 : f32 to vector<16x128xf32>
    %171 = arith.subf %170, %167 : vector<16x128xf32>
    %172 = arith.select %169, %167, %171 : vector<16x128xi1>, vector<16x128xf32>
    %cst_80 = arith.constant 1.000000e+00 : f32
    %173 = vector.broadcast %cst_80 : f32 to vector<16x128xf32>
    %174 = arith.addf %173, %172 : vector<16x128xf32>
    %175 = arith.mulf %137, %174 : vector<16x128xf32>
    %c0_81 = arith.constant 0 : index
    %c0_82 = arith.constant 0 : index
    %c0_83 = arith.constant 0 : index
    %176 = vector.load %arg13[%c0_81, %c0_82, %c0_83] : memref<2x128x32xf32, #tpu.memory_space<vmem>>, vector<1x128x32xf32>
    %177 = vector.shape_cast %176 : vector<1x128x32xf32> to vector<128x32xf32>
    %cst_84 = arith.constant dense<0.000000e+00> : vector<16x32xf32>
    %178 = tpu.matmul %175, %177, %cst_84 {dimension_numbers = #tpu.dot_dimension_numbers<[1], [0], [0], [1], [0, 0, 1, 1], [], []>} : vector<16x128xf32>, vector<128x32xf32>, vector<16x32xf32> -> vector<16x32xf32>
    %c0_85 = arith.constant 0 : index
    %c0_86 = arith.constant 0 : index
    %c0_87 = arith.constant 0 : index
    %179 = vector.load %arg14[%c0_85, %c0_86, %c0_87] : memref<2x1x32xf32, #tpu.memory_space<vmem>>, vector<1x1x32xf32>
    %180 = vector.shape_cast %179 : vector<1x1x32xf32> to vector<1x32xf32>
    %181 = vector.broadcast %180 : vector<1x32xf32> to vector<16x32xf32>
    %182 = arith.addf %178, %181 : vector<16x32xf32>
    %183 = arith.addf %182, %102 : vector<16x32xf32>
    %c1 = arith.constant 1 : index
    %c0_88 = arith.constant 0 : index
    %c0_89 = arith.constant 0 : index
    %184 = vector.load %arg2[%c1, %c0_88, %c0_89] : memref<2x1x32xf32, #tpu.memory_space<vmem>>, vector<1x1x32xf32>
    %185 = vector.shape_cast %184 : vector<1x1x32xf32> to vector<1x32xf32>
    %c1_90 = arith.constant 1 : index
    %c0_91 = arith.constant 0 : index
    %c0_92 = arith.constant 0 : index
    %186 = vector.load %arg3[%c1_90, %c0_91, %c0_92] : memref<2x1x32xf32, #tpu.memory_space<vmem>>, vector<1x1x32xf32>
    %187 = vector.shape_cast %186 : vector<1x1x32xf32> to vector<1x32xf32>
    %cst_93 = arith.constant dense<0.000000e+00> : vector<16xf32>
    %188 = vector.multi_reduction <add>, %183, %cst_93 [1] : vector<16x32xf32> to vector<16xf32>
    %189 = vector.shape_cast %188 : vector<16xf32> to vector<16x1xf32>
    %cst_94 = arith.constant 3.200000e+01 : f32
    %190 = vector.broadcast %cst_94 : f32 to vector<16x1xf32>
    %191 = arith.divf %189, %190 : vector<16x1xf32>
    %192 = vector.broadcast %191 : vector<16x1xf32> to vector<16x32xf32>
    %193 = arith.subf %183, %192 : vector<16x32xf32>
    %194 = arith.mulf %193, %193 : vector<16x32xf32>
    %cst_95 = arith.constant dense<0.000000e+00> : vector<16xf32>
    %195 = vector.multi_reduction <add>, %194, %cst_95 [1] : vector<16x32xf32> to vector<16xf32>
    %196 = vector.shape_cast %195 : vector<16xf32> to vector<16x1xf32>
    %cst_96 = arith.constant 3.200000e+01 : f32
    %197 = vector.broadcast %cst_96 : f32 to vector<16x1xf32>
    %198 = arith.divf %196, %197 : vector<16x1xf32>
    %199 = vector.broadcast %191 : vector<16x1xf32> to vector<16x32xf32>
    %200 = arith.subf %183, %199 : vector<16x32xf32>
    %cst_97 = arith.constant 9.99999974E-6 : f32
    %201 = vector.broadcast %cst_97 : f32 to vector<16x1xf32>
    %202 = arith.addf %198, %201 : vector<16x1xf32>
    %203 = math.rsqrt %202 : vector<16x1xf32>
    %204 = vector.broadcast %203 : vector<16x1xf32> to vector<16x32xf32>
    %205 = arith.mulf %200, %204 : vector<16x32xf32>
    %206 = vector.broadcast %185 : vector<1x32xf32> to vector<16x32xf32>
    %207 = arith.mulf %205, %206 : vector<16x32xf32>
    %208 = vector.broadcast %187 : vector<1x32xf32> to vector<16x32xf32>
    %209 = arith.addf %207, %208 : vector<16x32xf32>
    %c1_98 = arith.constant 1 : index
    %c0_99 = arith.constant 0 : index
    %c0_100 = arith.constant 0 : index
    %210 = vector.load %arg4[%c1_98, %c0_99, %c0_100] : memref<2x32x96xf32, #tpu.memory_space<vmem>>, vector<1x32x96xf32>
    %211 = vector.shape_cast %210 : vector<1x32x96xf32> to vector<32x96xf32>
    %cst_101 = arith.constant dense<0.000000e+00> : vector<16x96xf32>
    %212 = tpu.matmul %209, %211, %cst_101 {dimension_numbers = #tpu.dot_dimension_numbers<[1], [0], [0], [1], [0, 0, 1, 1], [], []>} : vector<16x32xf32>, vector<32x96xf32>, vector<16x96xf32> -> vector<16x96xf32>
    %213 = vector.extract_strided_slice %212 {offsets = [0, 0], sizes = [16, 32], strides = [1, 1]} : vector<16x96xf32> to vector<16x32xf32>
    %214 = vector.extract_strided_slice %212 {offsets = [0, 32], sizes = [16, 32], strides = [1, 1]} : vector<16x96xf32> to vector<16x32xf32>
    %215 = vector.extract_strided_slice %212 {offsets = [0, 64], sizes = [16, 32], strides = [1, 1]} : vector<16x96xf32> to vector<16x32xf32>
    %216 = vector.extract_strided_slice %213 {offsets = [0, 0], sizes = [8, 32], strides = [1, 1]} : vector<16x32xf32> to vector<8x32xf32>
    %217 = vector.extract_strided_slice %214 {offsets = [0, 0], sizes = [8, 32], strides = [1, 1]} : vector<16x32xf32> to vector<8x32xf32>
    %218 = vector.extract_strided_slice %215 {offsets = [0, 0], sizes = [8, 32], strides = [1, 1]} : vector<16x32xf32> to vector<8x32xf32>
    %219 = tpu.concatenate %216, %216, %216, %216 in 0 : vector<8x32xf32>, vector<8x32xf32>, vector<8x32xf32>, vector<8x32xf32> -> vector<32x32xf32>
    %220 = arith.mulf %219, %1 : vector<32x32xf32>
    %cst_102 = arith.constant dense<0.000000e+00> : vector<32x8xf32>
    %221 = tpu.matmul %220, %217, %cst_102 {dimension_numbers = #tpu.dot_dimension_numbers<[1], [1], [0], [0], [0, 0, 1, 0], [], []>} : vector<32x32xf32>, vector<8x32xf32>, vector<32x8xf32> -> vector<32x8xf32>
    %c1_103 = arith.constant 1 : index
    %c0_104 = arith.constant 0 : index
    %c0_105 = arith.constant 0 : index
    %222 = vector.load %arg5[%c1_103, %c0_104, %c0_105] : memref<2x32x32xf32, #tpu.memory_space<vmem>>, vector<1x32x32xf32>
    %223 = vector.shape_cast %222 : vector<1x32x32xf32> to vector<32x32xf32>
    %cst_106 = arith.constant dense<0.000000e+00> : vector<32x8xf32>
    %224 = tpu.matmul %223, %221, %cst_106 {dimension_numbers = #tpu.dot_dimension_numbers<[1], [0], [0], [1], [0, 0, 1, 1], [], []>} : vector<32x32xf32>, vector<32x8xf32>, vector<32x8xf32> -> vector<32x8xf32>
    %cst_107 = arith.constant dense<0xFF800000> : vector<32xf32>
    %225 = vector.multi_reduction <maximumf>, %224, %cst_107 [1] : vector<32x8xf32> to vector<32xf32>
    %226 = vector.shape_cast %225 : vector<32xf32> to vector<32x1xf32>
    %227 = vector.broadcast %226 : vector<32x1xf32> to vector<32x8xf32>
    %228 = arith.subf %224, %227 : vector<32x8xf32>
    %229 = math.exp %228 : vector<32x8xf32>
    %cst_108 = arith.constant dense<0.000000e+00> : vector<32xf32>
    %230 = vector.multi_reduction <add>, %229, %cst_108 [1] : vector<32x8xf32> to vector<32xf32>
    %231 = vector.shape_cast %230 : vector<32xf32> to vector<32x1xf32>
    %232 = vector.broadcast %231 : vector<32x1xf32> to vector<32x8xf32>
    %233 = arith.divf %229, %232 : vector<32x8xf32>
    %c1_109 = arith.constant 1 : index
    %c0_110 = arith.constant 0 : index
    %c0_111 = arith.constant 0 : index
    %234 = vector.load %arg6[%c1_109, %c0_110, %c0_111] : memref<2x32x32xf32, #tpu.memory_space<vmem>>, vector<1x32x32xf32>
    %235 = vector.shape_cast %234 : vector<1x32x32xf32> to vector<32x32xf32>
    %cst_112 = arith.constant dense<0.000000e+00> : vector<32x8xf32>
    %236 = tpu.matmul %235, %233, %cst_112 {dimension_numbers = #tpu.dot_dimension_numbers<[1], [0], [0], [1], [0, 0, 1, 1], [], []>} : vector<32x32xf32>, vector<32x8xf32>, vector<32x8xf32> -> vector<32x8xf32>
    %cst_113 = arith.constant dense<0.000000e+00> : vector<32x32xf32>
    %237 = tpu.matmul %236, %218, %cst_113 {dimension_numbers = #tpu.dot_dimension_numbers<[1], [0], [0], [1], [0, 0, 1, 1], [], []>} : vector<32x8xf32>, vector<8x32xf32>, vector<32x32xf32> -> vector<32x32xf32>
    %238 = arith.mulf %237, %1 : vector<32x32xf32>
    %239 = vector.extract_strided_slice %238 {offsets = [0, 0], sizes = [8, 32], strides = [1, 1]} : vector<32x32xf32> to vector<8x32xf32>
    %240 = vector.extract_strided_slice %238 {offsets = [8, 0], sizes = [8, 32], strides = [1, 1]} : vector<32x32xf32> to vector<8x32xf32>
    %241 = arith.addf %239, %240 : vector<8x32xf32>
    %242 = vector.extract_strided_slice %238 {offsets = [16, 0], sizes = [8, 32], strides = [1, 1]} : vector<32x32xf32> to vector<8x32xf32>
    %243 = arith.addf %241, %242 : vector<8x32xf32>
    %244 = vector.extract_strided_slice %238 {offsets = [24, 0], sizes = [8, 32], strides = [1, 1]} : vector<32x32xf32> to vector<8x32xf32>
    %245 = arith.addf %243, %244 : vector<8x32xf32>
    %246 = vector.extract_strided_slice %213 {offsets = [8, 0], sizes = [8, 32], strides = [1, 1]} : vector<16x32xf32> to vector<8x32xf32>
    %247 = vector.extract_strided_slice %214 {offsets = [8, 0], sizes = [8, 32], strides = [1, 1]} : vector<16x32xf32> to vector<8x32xf32>
    %248 = vector.extract_strided_slice %215 {offsets = [8, 0], sizes = [8, 32], strides = [1, 1]} : vector<16x32xf32> to vector<8x32xf32>
    %249 = tpu.concatenate %246, %246, %246, %246 in 0 : vector<8x32xf32>, vector<8x32xf32>, vector<8x32xf32>, vector<8x32xf32> -> vector<32x32xf32>
    %250 = arith.mulf %249, %1 : vector<32x32xf32>
    %cst_114 = arith.constant dense<0.000000e+00> : vector<32x8xf32>
    %251 = tpu.matmul %250, %247, %cst_114 {dimension_numbers = #tpu.dot_dimension_numbers<[1], [1], [0], [0], [0, 0, 1, 0], [], []>} : vector<32x32xf32>, vector<8x32xf32>, vector<32x8xf32> -> vector<32x8xf32>
    %c1_115 = arith.constant 1 : index
    %c0_116 = arith.constant 0 : index
    %c0_117 = arith.constant 0 : index
    %252 = vector.load %arg5[%c1_115, %c0_116, %c0_117] : memref<2x32x32xf32, #tpu.memory_space<vmem>>, vector<1x32x32xf32>
    %253 = vector.shape_cast %252 : vector<1x32x32xf32> to vector<32x32xf32>
    %cst_118 = arith.constant dense<0.000000e+00> : vector<32x8xf32>
    %254 = tpu.matmul %253, %251, %cst_118 {dimension_numbers = #tpu.dot_dimension_numbers<[1], [0], [0], [1], [0, 0, 1, 1], [], []>} : vector<32x32xf32>, vector<32x8xf32>, vector<32x8xf32> -> vector<32x8xf32>
    %cst_119 = arith.constant dense<0xFF800000> : vector<32xf32>
    %255 = vector.multi_reduction <maximumf>, %254, %cst_119 [1] : vector<32x8xf32> to vector<32xf32>
    %256 = vector.shape_cast %255 : vector<32xf32> to vector<32x1xf32>
    %257 = vector.broadcast %256 : vector<32x1xf32> to vector<32x8xf32>
    %258 = arith.subf %254, %257 : vector<32x8xf32>
    %259 = math.exp %258 : vector<32x8xf32>
    %cst_120 = arith.constant dense<0.000000e+00> : vector<32xf32>
    %260 = vector.multi_reduction <add>, %259, %cst_120 [1] : vector<32x8xf32> to vector<32xf32>
    %261 = vector.shape_cast %260 : vector<32xf32> to vector<32x1xf32>
    %262 = vector.broadcast %261 : vector<32x1xf32> to vector<32x8xf32>
    %263 = arith.divf %259, %262 : vector<32x8xf32>
    %c1_121 = arith.constant 1 : index
    %c0_122 = arith.constant 0 : index
    %c0_123 = arith.constant 0 : index
    %264 = vector.load %arg6[%c1_121, %c0_122, %c0_123] : memref<2x32x32xf32, #tpu.memory_space<vmem>>, vector<1x32x32xf32>
    %265 = vector.shape_cast %264 : vector<1x32x32xf32> to vector<32x32xf32>
    %cst_124 = arith.constant dense<0.000000e+00> : vector<32x8xf32>
    %266 = tpu.matmul %265, %263, %cst_124 {dimension_numbers = #tpu.dot_dimension_numbers<[1], [0], [0], [1], [0, 0, 1, 1], [], []>} : vector<32x32xf32>, vector<32x8xf32>, vector<32x8xf32> -> vector<32x8xf32>
    %cst_125 = arith.constant dense<0.000000e+00> : vector<32x32xf32>
    %267 = tpu.matmul %266, %248, %cst_125 {dimension_numbers = #tpu.dot_dimension_numbers<[1], [0], [0], [1], [0, 0, 1, 1], [], []>} : vector<32x8xf32>, vector<8x32xf32>, vector<32x32xf32> -> vector<32x32xf32>
    %268 = arith.mulf %267, %1 : vector<32x32xf32>
    %269 = vector.extract_strided_slice %268 {offsets = [0, 0], sizes = [8, 32], strides = [1, 1]} : vector<32x32xf32> to vector<8x32xf32>
    %270 = vector.extract_strided_slice %268 {offsets = [8, 0], sizes = [8, 32], strides = [1, 1]} : vector<32x32xf32> to vector<8x32xf32>
    %271 = arith.addf %269, %270 : vector<8x32xf32>
    %272 = vector.extract_strided_slice %268 {offsets = [16, 0], sizes = [8, 32], strides = [1, 1]} : vector<32x32xf32> to vector<8x32xf32>
    %273 = arith.addf %271, %272 : vector<8x32xf32>
    %274 = vector.extract_strided_slice %268 {offsets = [24, 0], sizes = [8, 32], strides = [1, 1]} : vector<32x32xf32> to vector<8x32xf32>
    %275 = arith.addf %273, %274 : vector<8x32xf32>
    %276 = tpu.concatenate %245, %275 in 0 : vector<8x32xf32>, vector<8x32xf32> -> vector<16x32xf32>
    %c1_126 = arith.constant 1 : index
    %c0_127 = arith.constant 0 : index
    %c0_128 = arith.constant 0 : index
    %277 = vector.load %arg7[%c1_126, %c0_127, %c0_128] : memref<2x32x32xf32, #tpu.memory_space<vmem>>, vector<1x32x32xf32>
    %278 = vector.shape_cast %277 : vector<1x32x32xf32> to vector<32x32xf32>
    %cst_129 = arith.constant dense<0.000000e+00> : vector<16x32xf32>
    %279 = tpu.matmul %276, %278, %cst_129 {dimension_numbers = #tpu.dot_dimension_numbers<[1], [0], [0], [1], [0, 0, 1, 1], [], []>} : vector<16x32xf32>, vector<32x32xf32>, vector<16x32xf32> -> vector<16x32xf32>
    %c1_130 = arith.constant 1 : index
    %c0_131 = arith.constant 0 : index
    %c0_132 = arith.constant 0 : index
    %280 = vector.load %arg8[%c1_130, %c0_131, %c0_132] : memref<2x1x32xf32, #tpu.memory_space<vmem>>, vector<1x1x32xf32>
    %281 = vector.shape_cast %280 : vector<1x1x32xf32> to vector<1x32xf32>
    %282 = vector.broadcast %281 : vector<1x32xf32> to vector<16x32xf32>
    %283 = arith.addf %279, %282 : vector<16x32xf32>
    %284 = arith.addf %283, %183 : vector<16x32xf32>
    %c1_133 = arith.constant 1 : index
    %c0_134 = arith.constant 0 : index
    %c0_135 = arith.constant 0 : index
    %285 = vector.load %arg9[%c1_133, %c0_134, %c0_135] : memref<2x1x32xf32, #tpu.memory_space<vmem>>, vector<1x1x32xf32>
    %286 = vector.shape_cast %285 : vector<1x1x32xf32> to vector<1x32xf32>
    %c1_136 = arith.constant 1 : index
    %c0_137 = arith.constant 0 : index
    %c0_138 = arith.constant 0 : index
    %287 = vector.load %arg10[%c1_136, %c0_137, %c0_138] : memref<2x1x32xf32, #tpu.memory_space<vmem>>, vector<1x1x32xf32>
    %288 = vector.shape_cast %287 : vector<1x1x32xf32> to vector<1x32xf32>
    %cst_139 = arith.constant dense<0.000000e+00> : vector<16xf32>
    %289 = vector.multi_reduction <add>, %284, %cst_139 [1] : vector<16x32xf32> to vector<16xf32>
    %290 = vector.shape_cast %289 : vector<16xf32> to vector<16x1xf32>
    %cst_140 = arith.constant 3.200000e+01 : f32
    %291 = vector.broadcast %cst_140 : f32 to vector<16x1xf32>
    %292 = arith.divf %290, %291 : vector<16x1xf32>
    %293 = vector.broadcast %292 : vector<16x1xf32> to vector<16x32xf32>
    %294 = arith.subf %284, %293 : vector<16x32xf32>
    %295 = arith.mulf %294, %294 : vector<16x32xf32>
    %cst_141 = arith.constant dense<0.000000e+00> : vector<16xf32>
    %296 = vector.multi_reduction <add>, %295, %cst_141 [1] : vector<16x32xf32> to vector<16xf32>
    %297 = vector.shape_cast %296 : vector<16xf32> to vector<16x1xf32>
    %cst_142 = arith.constant 3.200000e+01 : f32
    %298 = vector.broadcast %cst_142 : f32 to vector<16x1xf32>
    %299 = arith.divf %297, %298 : vector<16x1xf32>
    %300 = vector.broadcast %292 : vector<16x1xf32> to vector<16x32xf32>
    %301 = arith.subf %284, %300 : vector<16x32xf32>
    %cst_143 = arith.constant 9.99999974E-6 : f32
    %302 = vector.broadcast %cst_143 : f32 to vector<16x1xf32>
    %303 = arith.addf %299, %302 : vector<16x1xf32>
    %304 = math.rsqrt %303 : vector<16x1xf32>
    %305 = vector.broadcast %304 : vector<16x1xf32> to vector<16x32xf32>
    %306 = arith.mulf %301, %305 : vector<16x32xf32>
    %307 = vector.broadcast %286 : vector<1x32xf32> to vector<16x32xf32>
    %308 = arith.mulf %306, %307 : vector<16x32xf32>
    %309 = vector.broadcast %288 : vector<1x32xf32> to vector<16x32xf32>
    %310 = arith.addf %308, %309 : vector<16x32xf32>
    %c1_144 = arith.constant 1 : index
    %c0_145 = arith.constant 0 : index
    %c0_146 = arith.constant 0 : index
    %311 = vector.load %arg11[%c1_144, %c0_145, %c0_146] : memref<2x32x128xf32, #tpu.memory_space<vmem>>, vector<1x32x128xf32>
    %312 = vector.shape_cast %311 : vector<1x32x128xf32> to vector<32x128xf32>
    %cst_147 = arith.constant dense<0.000000e+00> : vector<16x128xf32>
    %313 = tpu.matmul %310, %312, %cst_147 {dimension_numbers = #tpu.dot_dimension_numbers<[1], [0], [0], [1], [0, 0, 1, 1], [], []>} : vector<16x32xf32>, vector<32x128xf32>, vector<16x128xf32> -> vector<16x128xf32>
    %c1_148 = arith.constant 1 : index
    %c0_149 = arith.constant 0 : index
    %c0_150 = arith.constant 0 : index
    %314 = vector.load %arg12[%c1_148, %c0_149, %c0_150] : memref<2x1x128xf32, #tpu.memory_space<vmem>>, vector<1x1x128xf32>
    %315 = vector.shape_cast %314 : vector<1x1x128xf32> to vector<1x128xf32>
    %316 = vector.broadcast %315 : vector<1x128xf32> to vector<16x128xf32>
    %317 = arith.addf %313, %316 : vector<16x128xf32>
    %cst_151 = arith.constant 5.000000e-01 : f32
    %318 = vector.broadcast %cst_151 : f32 to vector<16x128xf32>
    %319 = arith.mulf %318, %317 : vector<16x128xf32>
    %cst_152 = arith.constant 0.707106769 : f32
    %320 = vector.broadcast %cst_152 : f32 to vector<16x128xf32>
    %321 = arith.mulf %317, %320 : vector<16x128xf32>
    %322 = math.absf %321 : vector<16x128xf32>
    %cst_153 = arith.constant 0.327591091 : f32
    %323 = vector.broadcast %cst_153 : f32 to vector<16x128xf32>
    %324 = arith.mulf %323, %322 : vector<16x128xf32>
    %cst_154 = arith.constant 1.000000e+00 : f32
    %325 = vector.broadcast %cst_154 : f32 to vector<16x128xf32>
    %326 = arith.addf %325, %324 : vector<16x128xf32>
    %cst_155 = arith.constant 1.000000e+00 : f32
    %327 = vector.broadcast %cst_155 : f32 to vector<16x128xf32>
    %328 = arith.divf %327, %326 : vector<16x128xf32>
    %cst_156 = arith.constant 1.06140542 : f32
    %329 = vector.broadcast %cst_156 : f32 to vector<16x128xf32>
    %330 = arith.mulf %329, %328 : vector<16x128xf32>
    %cst_157 = arith.constant -1.45315206 : f32
    %331 = vector.broadcast %cst_157 : f32 to vector<16x128xf32>
    %332 = arith.addf %330, %331 : vector<16x128xf32>
    %333 = arith.mulf %332, %328 : vector<16x128xf32>
    %cst_158 = arith.constant 1.42141378 : f32
    %334 = vector.broadcast %cst_158 : f32 to vector<16x128xf32>
    %335 = arith.addf %333, %334 : vector<16x128xf32>
    %336 = arith.mulf %335, %328 : vector<16x128xf32>
    %cst_159 = arith.constant -0.284496725 : f32
    %337 = vector.broadcast %cst_159 : f32 to vector<16x128xf32>
    %338 = arith.addf %336, %337 : vector<16x128xf32>
    %339 = arith.mulf %338, %328 : vector<16x128xf32>
    %cst_160 = arith.constant 0.254829586 : f32
    %340 = vector.broadcast %cst_160 : f32 to vector<16x128xf32>
    %341 = arith.addf %339, %340 : vector<16x128xf32>
    %342 = arith.mulf %341, %328 : vector<16x128xf32>
    %cst_161 = arith.constant 0.000000e+00 : f32
    %343 = vector.broadcast %cst_161 : f32 to vector<16x128xf32>
    %344 = arith.subf %343, %322 : vector<16x128xf32>
    %345 = arith.mulf %344, %322 : vector<16x128xf32>
    %346 = math.exp %345 : vector<16x128xf32>
    %347 = arith.mulf %342, %346 : vector<16x128xf32>
    %cst_162 = arith.constant 1.000000e+00 : f32
    %348 = vector.broadcast %cst_162 : f32 to vector<16x128xf32>
    %349 = arith.subf %348, %347 : vector<16x128xf32>
    %cst_163 = arith.constant 0.000000e+00 : f32
    %350 = vector.broadcast %cst_163 : f32 to vector<16x128xf32>
    %351 = arith.cmpf oge, %321, %350 : vector<16x128xf32>
    %cst_164 = arith.constant 0.000000e+00 : f32
    %352 = vector.broadcast %cst_164 : f32 to vector<16x128xf32>
    %353 = arith.subf %352, %349 : vector<16x128xf32>
    %354 = arith.select %351, %349, %353 : vector<16x128xi1>, vector<16x128xf32>
    %cst_165 = arith.constant 1.000000e+00 : f32
    %355 = vector.broadcast %cst_165 : f32 to vector<16x128xf32>
    %356 = arith.addf %355, %354 : vector<16x128xf32>
    %357 = arith.mulf %319, %356 : vector<16x128xf32>
    %c1_166 = arith.constant 1 : index
    %c0_167 = arith.constant 0 : index
    %c0_168 = arith.constant 0 : index
    %358 = vector.load %arg13[%c1_166, %c0_167, %c0_168] : memref<2x128x32xf32, #tpu.memory_space<vmem>>, vector<1x128x32xf32>
    %359 = vector.shape_cast %358 : vector<1x128x32xf32> to vector<128x32xf32>
    %cst_169 = arith.constant dense<0.000000e+00> : vector<16x32xf32>
    %360 = tpu.matmul %357, %359, %cst_169 {dimension_numbers = #tpu.dot_dimension_numbers<[1], [0], [0], [1], [0, 0, 1, 1], [], []>} : vector<16x128xf32>, vector<128x32xf32>, vector<16x32xf32> -> vector<16x32xf32>
    %c1_170 = arith.constant 1 : index
    %c0_171 = arith.constant 0 : index
    %c0_172 = arith.constant 0 : index
    %361 = vector.load %arg14[%c1_170, %c0_171, %c0_172] : memref<2x1x32xf32, #tpu.memory_space<vmem>>, vector<1x1x32xf32>
    %362 = vector.shape_cast %361 : vector<1x1x32xf32> to vector<1x32xf32>
    %363 = vector.broadcast %362 : vector<1x32xf32> to vector<16x32xf32>
    %364 = arith.addf %360, %363 : vector<16x32xf32>
    %365 = arith.addf %364, %284 : vector<16x32xf32>
    %c0_173 = arith.constant 0 : index
    %c0_174 = arith.constant 0 : index
    %366 = vector.load %arg15[%c0_173, %c0_174] : memref<16x32xf32, #tpu.memory_space<vmem>>, vector<16x32xf32>
    tpu.vector_store %arg15[%c0_173, %c0_174], %365 {strides = array<i32>} : memref<16x32xf32, #tpu.memory_space<vmem>>, vector<16x32xf32>,
    return
  }
}

</mosaic_0001>

<llo_original>
// kernel: tpu_custom_call.1
$region0: #{tpu_custom_call.1}
  #allocation0 [shape = 'u32[]', space=smem, size = 0x4, offset = 0x4, fixed_abs, tag = 'smem constant byte address 0x4 - core index']
  #allocation1 [shape = 'u32[72,128]{1,0:T(1,128)}', space=vmem, size = 0x9000, scoped, tag = 'internal scratch']
  %s0 = inlined_call_operand.hbm [shape: f32[16,32], index: 0, kind: input, shape index: {}]
  %s1 = inlined_call_operand.hbm [shape: f32[32,32], index: 1, kind: input, shape index: {}]
  %s2 = inlined_call_operand.hbm [shape: f32[2,1,32], index: 2, kind: input, shape index: {}]
  %s3 = inlined_call_operand.hbm [shape: f32[2,1,32], index: 3, kind: input, shape index: {}]
  %s4 = inlined_call_operand.vmem [shape: f32[2,32,96], index: 4, kind: input, shape index: {}]
  %s5 = inlined_call_operand.vmem [shape: f32[2,32,32], index: 5, kind: input, shape index: {}]
  %s6 = inlined_call_operand.vmem [shape: f32[2,32,32], index: 6, kind: input, shape index: {}]
  %s7 = inlined_call_operand.vmem [shape: f32[2,32,32], index: 7, kind: input, shape index: {}]
  %s8 = inlined_call_operand.vmem [shape: f32[2,1,32], index: 8, kind: input, shape index: {}]
  %s9 = inlined_call_operand.vmem [shape: f32[2,1,32], index: 9, kind: input, shape index: {}]
  %s10 = inlined_call_operand.vmem [shape: f32[2,1,32], index: 10, kind: input, shape index: {}]
  %s11 = inlined_call_operand.vmem [shape: f32[2,32,128], index: 11, kind: input, shape index: {}]
  %s12 = inlined_call_operand.vmem [shape: f32[2,1,128], index: 12, kind: input, shape index: {}]
  %s13 = inlined_call_operand.vmem [shape: f32[2,128,32], index: 13, kind: input, shape index: {}]
  %s14 = inlined_call_operand.vmem [shape: f32[2,1,32], index: 14, kind: input, shape index: {}]
  %s15 = inlined_call_operand.hbm [shape: f32[16,32], index: 15, kind: output, shape index: {}]
  %s16 = sld [smem:[#allocation0]]
  $region86: #{tpu_custom_call.1} parent=0
    _
  %s18 = ssub.s32 1, %s16
  %s19 = scalar_select 0, %s18, %s16
  $region1: #{tpu_custom_call.1} parent=0
    #allocation2 [shape = 'u8[8192]{0}', space=vmem, size = 0x2000, scoped, tag = 'input window, operand 0, single buffered']
    #allocation3 [shape = 's32[1]{0}', space=sflag, size = 0x4, scoped, tag = 'scoped memory for tpu_custom_call.1']
    #allocation4 [shape = 's32[1]{0}', space=sflag, size = 0x4, scoped, tag = 'scoped memory for tpu_custom_call.1']
    #allocation5 [shape = 'u8[16384]{0}', space=vmem, size = 0x4000, scoped, tag = 'input window, operand 1, single buffered']
    #allocation6 [shape = 's32[1]{0}', space=sflag, size = 0x4, scoped, tag = 'scoped memory for tpu_custom_call.1']
    #allocation7 [shape = 'u8[1024]{0}', space=vmem, size = 0x400, scoped, tag = 'input window, operand 2, single buffered']
    #allocation8 [shape = 'u8[1024]{0}', space=vmem, size = 0x400, scoped, tag = 'input window, operand 3, single buffered']
    #allocation9 [shape = 's32[1]{0}', space=sflag, size = 0x4, scoped, tag = 'scoped memory for tpu_custom_call.1']
    #allocation10 [shape = 'u8[8192]{0}', space=vmem, size = 0x2000, scoped, tag = 'output window, operand 0, single buffered']
    %20 = vsyncpa [#allocation3], 0
    %21 = vsyncpa [#allocation6], 0
    %22 = vsyncpa [#allocation9], 0
    %23 = vsyncpa [#allocation4], 0
    // Predicated region
    $region2: #{tpu_custom_call.1} parent=1 // pred_check
      _
    $region3: #{tpu_custom_call.1} parent=1 // pred_check_branch
      %25 = sbr.rel (0) target = $region5
    $region4: #{tpu_custom_call.1} parent=1 // pred_region
      %27 = vsyncadd [#allocation3], 0
      %s28 = sshll.u32 %s0, 4
      %s29 = int_to_ptr.hbm [resolvable:$true] %s28
      %s30 = sshll.u32 [#allocation2], 4
      %s31 = int_to_ptr.vmem [resolvable:$true] %s30
      %36 = dma.hbm_to_vmem [thread:$0]  %s29, 256, %s31, [#allocation3], 128, 128, 8
    $region5: #{tpu_custom_call.1} parent=1 // pred_fallthru
      _
    // Predicated region
    $region6: #{tpu_custom_call.1} parent=1 // pred_check
      _
    $region7: #{tpu_custom_call.1} parent=1 // pred_check_branch
      %38 = sbr.rel (0) target = $region9
    $region8: #{tpu_custom_call.1} parent=1 // pred_region
      %40 = vsyncadd [#allocation6], 0
      %s41 = sshll.u32 %s1, 4
      %s42 = int_to_ptr.hbm [resolvable:$true] %s41
      %s43 = sshll.u32 [#allocation5], 4
      %s44 = int_to_ptr.vmem [resolvable:$true] %s43
      %49 = dma.hbm_to_vmem [thread:$0]  %s42, 512, %s44, [#allocation6], 128, 128, 8
    $region9: #{tpu_custom_call.1} parent=1 // pred_fallthru
      _
    // Predicated region
    $region10: #{tpu_custom_call.1} parent=1 // pred_check
      _
    $region11: #{tpu_custom_call.1} parent=1 // pred_check_branch
      %51 = sbr.rel (0) target = $region13
    $region12: #{tpu_custom_call.1} parent=1 // pred_region
      %53 = vsyncadd [#allocation6], 0
      %s54 = sshll.u32 %s2, 4
      %s55 = int_to_ptr.hbm [resolvable:$true] %s54
      %s56 = sshll.u32 [#allocation7], 4
      %s57 = int_to_ptr.vmem [resolvable:$true] %s56
      %62 = dma.hbm_to_vmem [thread:$0]  %s55, 32, %s57, [#allocation6], 16, 16, 1
    $region13: #{tpu_custom_call.1} parent=1 // pred_fallthru
      _
    // Predicated region
    $region14: #{tpu_custom_call.1} parent=1 // pred_check
      _
    $region15: #{tpu_custom_call.1} parent=1 // pred_check_branch
      %64 = sbr.rel (0) target = $region17
    $region16: #{tpu_custom_call.1} parent=1 // pred_region
      %66 = vsyncadd [#allocation9], 0
      %s67 = sshll.u32 %s3, 4
      %s68 = int_to_ptr.hbm [resolvable:$true] %s67
      %s69 = sshll.u32 [#allocation8], 4
      %s70 = int_to_ptr.vmem [resolvable:$true] %s69
      %75 = dma.hbm_to_vmem [thread:$0]  %s68, 32, %s70, [#allocation9], 16, 16, 1
    $region17: #{tpu_custom_call.1} parent=1 // pred_fallthru
      _
    // Predicated region
    $region18: #{tpu_custom_call.1} parent=1 // pred_check
      _
    $region19: #{tpu_custom_call.1} parent=1 // pred_check_branch
      %77 = sbr.rel (0) target = $region21
    $region20: #{tpu_custom_call.1} parent=1 // pred_region
      _
    $region21: #{tpu_custom_call.1} parent=1 // pred_fallthru
      _
    // Predicated region
    $region22: #{tpu_custom_call.1} parent=1 // pred_check
      _
    $region23: #{tpu_custom_call.1} parent=1 // pred_check_branch
      %79 = sbr.rel (0) target = $region25
    $region24: #{tpu_custom_call.1} parent=1 // pred_region
      _
    $region25: #{tpu_custom_call.1} parent=1 // pred_fallthru
      _
    // Predicated region
    $region26: #{tpu_custom_call.1} parent=1 // pred_check
      _
    $region27: #{tpu_custom_call.1} parent=1 // pred_check_branch
      %81 = sbr.rel (0) target = $region29
    $region28: #{tpu_custom_call.1} parent=1 // pred_region
      _
    $region29: #{tpu_custom_call.1} parent=1 // pred_fallthru
      _
    // Predicated region
    $region30: #{tpu_custom_call.1} parent=1 // pred_check
      _
    $region31: #{tpu_custom_call.1} parent=1 // pred_check_branch
      %83 = sbr.rel (0) target = $region33
    $region32: #{tpu_custom_call.1} parent=1 // pred_region
      _
    $region33: #{tpu_custom_call.1} parent=1 // pred_fallthru
      _
    // Predicated region
    $region34: #{tpu_custom_call.1} parent=1 // pred_check
      _
    $region35: #{tpu_custom_call.1} parent=1 // pred_check_branch
      %85 = sbr.rel (0) target = $region37
    $region36: #{tpu_custom_call.1} parent=1 // pred_region
      _
    $region37: #{tpu_custom_call.1} parent=1 // pred_fallthru
      _
    // Predicated region
    $region38: #{tpu_custom_call.1} parent=1 // pred_check
      _
    $region39: #{tpu_custom_call.1} parent=1 // pred_check_branch
      %87 = sbr.rel (0) target = $region41
    $region40: #{tpu_custom_call.1} parent=1 // pred_region
      _
    $region41: #{tpu_custom_call.1} parent=1 // pred_fallthru
      _
    // Predicated region
    $region42: #{tpu_custom_call.1} parent=1 // pred_check
      _
    $region43: #{tpu_custom_call.1} parent=1 // pred_check_branch
      %89 = sbr.rel (0) target = $region45
    $region44: #{tpu_custom_call.1} parent=1 // pred_region
      _
    $region45: #{tpu_custom_call.1} parent=1 // pred_fallthru
      _
    // Predicated region
    $region46: #{tpu_custom_call.1} parent=1 // pred_check
      _
    $region47: #{tpu_custom_call.1} parent=1 // pred_check_branch
      %91 = sbr.rel (0) target = $region49
    $region48: #{tpu_custom_call.1} parent=1 // pred_region
      _
    $region49: #{tpu_custom_call.1} parent=1 // pred_fallthru
      _
    // Predicated region
    $region50: #{tpu_custom_call.1} parent=1 // pred_check
      _
    $region51: #{tpu_custom_call.1} parent=1 // pred_check_branch
      %93 = sbr.rel (0) target = $region53
    $region52: #{tpu_custom_call.1} parent=1 // pred_region
      _
    $region53: #{tpu_custom_call.1} parent=1 // pred_fallthru
      _
    // Predicated region
    $region54: #{tpu_custom_call.1} parent=1 // pred_check
      _
    $region55: #{tpu_custom_call.1} parent=1 // pred_check_branch
      %95 = sbr.rel (0) target = $region57
    $region56: #{tpu_custom_call.1} parent=1 // pred_region
      _
    $region57: #{tpu_custom_call.1} parent=1 // pred_fallthru
      _
    // Predicated region
    $region58: #{tpu_custom_call.1} parent=1 // pred_check
      _
    $region59: #{tpu_custom_call.1} parent=1 // pred_check_branch
      %97 = sbr.rel (0) target = $region61
    $region60: #{tpu_custom_call.1} parent=1 // pred_region
      _
    $region61: #{tpu_custom_call.1} parent=1 // pred_fallthru
      _
    // Predicated region
    $region62: #{tpu_custom_call.1} parent=1 // pred_check
      _
    $region63: #{tpu_custom_call.1} parent=1 // pred_check_branch
      %99 = sbr.rel (0) target = $region65
    $region64: #{tpu_custom_call.1} parent=1 // pred_region
      %101 = dma.done [#allocation3], 256
    $region65: #{tpu_custom_call.1} parent=1 // pred_fallthru
      _
    // Predicated region
    $region66: #{tpu_custom_call.1} parent=1 // pred_check
      _
    $region67: #{tpu_custom_call.1} parent=1 // pred_check_branch
      %103 = sbr.rel (0) target = $region69
    $region68: #{tpu_custom_call.1} parent=1 // pred_region
      %105 = dma.done [#allocation6], 512
    $region69: #{tpu_custom_call.1} parent=1 // pred_fallthru
      _
    // Predicated region
    $region70: #{tpu_custom_call.1} parent=1 // pred_check
      _
    $region71: #{tpu_custom_call.1} parent=1 // pred_check_branch
      %107 = sbr.rel (0) target = $region73
    $region72: #{tpu_custom_call.1} parent=1 // pred_region
      %109 = dma.done [#allocation6], 32
    $region73: #{tpu_custom_call.1} parent=1 // pred_fallthru
      _
    // Predicated region
    $region74: #{tpu_custom_call.1} parent=1 // pred_check
      _
    $region75: #{tpu_custom_call.1} parent=1 // pred_check_branch
      %111 = sbr.rel (0) target = $region77
    $region76: #{tpu_custom_call.1} parent=1 // pred_region
      %113 = dma.done [#allocation9], 32
    $region77: #{tpu_custom_call.1} parent=1 // pred_fallthru
      _
    %v114 = vld [vmem:[#allocation2] sm:$0xff]
    %v115 = vld [vmem:[#allocation2 + $0x8] sm:$0xff]
    %v116 = vld [vmem:[#allocation5] sm:$0xff]
    %v117 = vld [vmem:[#allocation5 + $0x8] sm:$0xff]
    %v118 = vld [vmem:[#allocation5 + $0x10] sm:$0xff]
    %v119 = vld [vmem:[#allocation5 + $0x18] sm:$0xff]
    %v120 = vld [vmem:[#allocation7] sm:$0x1]
    %v121 = vld [vmem:[#allocation8] sm:$0x1]
    %vm122 = vcmask 261120
    %v123 = vsel %vm122, %v114, 0.0
    %124 = vadd.xlane.f32.xlu0 %v123
    %v125 = vpop.xlane.xlu0 %124
    %v126 = vsel %vm122, %v115, 0.0
    %127 = vadd.xlane.f32.xlu0 %v126
    %v128 = vpop.xlane.xlu0 %127
    %v129 = vrcp.pop 32.0
    %v130 = vmul.f32 32.0, %v129
    %v131 = vsub.f32 1.0, %v130
    %v132 = vmul.f32 %v129, %v131
    %v133 = vadd.f32 %v129, %v132
    %vm134 = vweird.f32 %v129
    %v135 = vsel %vm134, %v129, %v133
    %v136 = vmul.f32 %v125, %v135
    %v137 = vmul.f32 %v128, %v135
    %v138 = vsub.f32 %v114, %v136
    %v139 = vsub.f32 %v115, %v137
    %v140 = vmul.f32 %v138, %v138
    %v141 = vmul.f32 %v139, %v139
    %v142 = vsel %vm122, %v140, 0.0
    %143 = vadd.xlane.f32.xlu0 %v142
    %v144 = vpop.xlane.xlu0 %143
    %v145 = vsel %vm122, %v141, 0.0
    %146 = vadd.xlane.f32.xlu0 %v145
    %v147 = vpop.xlane.xlu0 %146
    %v148 = vmul.f32 %v144, %v135
    %v149 = vmul.f32 %v147, %v135
    %v150 = vadd.f32 %v148, 1e-05
    %v151 = vadd.f32 %v149, 1e-05
    %v152 = vrsqrt.pop %v150
    %v153 = vmul.f32 %v152, %v150
    %v154 = vmul.f32 %v153, %v152
    %v155 = vmul.f32 0.5, %v154
    %v156 = vsub.f32 1.5, %v155
    %v157 = vmul.f32 %v152, %v156
    %vm158 = vweird.f32 %v150
    %vm159 = vweird.f32 %v152
    %vm160 = vmor %vm158, %vm159
    %v161 = vsel %vm160, %v152, %v157
    %v162 = vrsqrt.pop %v151
    %v163 = vmul.f32 %v162, %v151
    %v164 = vmul.f32 %v163, %v162
    %v165 = vmul.f32 0.5, %v164
    %v166 = vsub.f32 1.5, %v165
    %v167 = vmul.f32 %v162, %v166
    %vm168 = vweird.f32 %v151
    %vm169 = vweird.f32 %v162
    %vm170 = vmor %vm168, %vm169
    %v171 = vsel %vm170, %v162, %v167
    %v172 = vmul.f32 %v138, %v161
    %v173 = vmul.f32 %v139, %v171
    %v175 = vperm.slane %v120, 0
    %v177 = vmul.f32 %v172, %v175
    %v178 = vmul.f32 %v173, %v175
    %v180 = vperm.slane %v121, 0
    %v182 = vadd.f32 %v177, %v180
    %v183 = vadd.f32 %v178, %v180
    %v184 = vld [vmem:[%s4] sm:$0xff]
    %v185 = vld [vmem:[%s4 + $0x8] sm:$0xff]
    %v186 = vld [vmem:[%s4 + $0x10] sm:$0xff]
    %v187 = vld [vmem:[%s4 + $0x18] sm:$0xff]
    %v189 = vsel %vm122, %v182, 0
    %v192 = vsel %vm122, %v183, 0
    %194 = vmatpush.msra.mxu0 0.0
    %195 = vmatpush.msra.mxu0 0.0
    %196 = vmatpush.msra.mxu0 0.0
    %197 = vmatpush.msra.mxu0 0.0
    %198 = vmatpush.msra.mxu0 0.0
    %199 = vmatpush.msra.mxu0 0.0
    %200 = vmatpush.msra.mxu0 0.0
    %201 = vmatpush.msra.mxu0 0.0
    %202 = vmatpush.msra.mxu0 0.0
    %203 = vmatpush.msra.mxu0 0.0
    %204 = vmatpush.msra.mxu0 0.0
    %205 = vmatpush.msra.mxu0 0.0
    %206 = vmatpush.msra.mxu0 %v187
    %207 = vmatpush.msra.mxu0 %v186
    %208 = vmatpush.msra.mxu0 %v185
    %209 = vmatpush.msra.mxu0 %v184
    %210 = vmatmul.f32.gmra.mxu0 %v189
    %v211 = vpop.f32.mrf.mxu0
    %v212 = vadd.f32 0.0, %v211
    %213 = vmatmul.f32.gmra.mxu0 %v192
    %v214 = vpop.f32.mrf.mxu0
    %v215 = vadd.f32 0.0, %v214
    %216 = vdwg.mxu0
    %v217 = vmul.f32 %v212, %v116
    %v218 = vmul.f32 %v212, %v117
    %v219 = vmul.f32 %v212, %v118
    %v220 = vmul.f32 %v212, %v119
    %222 = vrot.lane.b32.xlu0 %v212, 96
    %v223 = vpop.permute.xlu0 %222
    %v225 = vsel %vm122, %v217, 0
    %v228 = vsel %vm122, %v218, 0
    %v231 = vsel %vm122, %v219, 0
    %v234 = vsel %vm122, %v220, 0
    %v236 = vsel %vm122, %v223, 0
    %238 = vmatpush.xpose.msra.mxu0 0.0
    %239 = vmatpush.xpose.msra.mxu0 0.0
    %240 = vmatpush.xpose.msra.mxu0 0.0
    %241 = vmatpush.xpose.msra.mxu0 0.0
    %242 = vmatpush.xpose.msra.mxu0 0.0
    %243 = vmatpush.xpose.msra.mxu0 0.0
    %244 = vmatpush.xpose.msra.mxu0 0.0
    %245 = vmatpush.xpose.msra.mxu0 0.0
    %246 = vmatpush.xpose.msra.mxu0 0.0
    %247 = vmatpush.xpose.msra.mxu0 0.0
    %248 = vmatpush.xpose.msra.mxu0 0.0
    %249 = vmatpush.xpose.msra.mxu0 0.0
    %250 = vmatpush.xpose.msra.mxu0 0.0
    %251 = vmatpush.xpose.msra.mxu0 0.0
    %252 = vmatpush.xpose.msra.mxu0 0.0
    %253 = vmatpush.xpose.msra.mxu0 %v236
    %254 = vmatmul.f32.gmra.mxu0 %v225
    %v255 = vpop.f32.mrf.mxu0
    %v256 = vadd.f32 0.0, %v255
    %257 = vmatmul.f32.gmra.mxu0 %v228
    %v258 = vpop.f32.mrf.mxu0
    %v259 = vadd.f32 0.0, %v258
    %260 = vmatmul.f32.gmra.mxu0 %v231
    %v261 = vpop.f32.mrf.mxu0
    %v262 = vadd.f32 0.0, %v261
    %263 = vmatmul.f32.gmra.mxu0 %v234
    %v264 = vpop.f32.mrf.mxu0
    %v265 = vadd.f32 0.0, %v264
    %266 = vdwg.mxu0
    %v267 = vld [vmem:[%s5] sm:$0xff]
    %v268 = vld [vmem:[%s5 + $0x8] sm:$0xff]
    %v269 = vld [vmem:[%s5 + $0x10] sm:$0xff]
    %v270 = vld [vmem:[%s5 + $0x18] sm:$0xff]
    %v272 = vsel %vm122, %v267, 0
    %v275 = vsel %vm122, %v268, 0
    %v278 = vsel %vm122, %v269, 0
    %v281 = vsel %vm122, %v270, 0
    %283 = vmatpush.msra.mxu0 0.0
    %284 = vmatpush.msra.mxu0 0.0
    %285 = vmatpush.msra.mxu0 0.0
    %286 = vmatpush.msra.mxu0 0.0
    %287 = vmatpush.msra.mxu0 0.0
    %288 = vmatpush.msra.mxu0 0.0
    %289 = vmatpush.msra.mxu0 0.0
    %290 = vmatpush.msra.mxu0 0.0
    %291 = vmatpush.msra.mxu0 0.0
    %292 = vmatpush.msra.mxu0 0.0
    %293 = vmatpush.msra.mxu0 0.0
    %294 = vmatpush.msra.mxu0 0.0
    %295 = vmatpush.msra.mxu0 %v265
    %296 = vmatpush.msra.mxu0 %v262
    %297 = vmatpush.msra.mxu0 %v259
    %298 = vmatpush.msra.mxu0 %v256
    %299 = vmatmul.f32.gmra.mxu0 %v272
    %v300 = vpop.f32.mrf.mxu0
    %v301 = vadd.f32 0.0, %v300
    %302 = vmatmul.f32.gmra.mxu0 %v275
    %v303 = vpop.f32.mrf.mxu0
    %v304 = vadd.f32 0.0, %v303
    %305 = vmatmul.f32.gmra.mxu0 %v278
    %v306 = vpop.f32.mrf.mxu0
    %v307 = vadd.f32 0.0, %v306
    %308 = vmatmul.f32.gmra.mxu0 %v281
    %v309 = vpop.f32.mrf.mxu0
    %v310 = vadd.f32 0.0, %v309
    %311 = vdwg.mxu0
    %vm312 = vcmask 64512
    %v313 = vsel %vm312, %v301, -inf
    %314 = vmax.xlane.f32.xlu0 %v313
    %v315 = vpop.xlane.xlu0 %314
    %v316 = vsel %vm312, %v304, -inf
    %317 = vmax.xlane.f32.xlu0 %v316
    %v318 = vpop.xlane.xlu0 %317
    %v319 = vsel %vm312, %v307, -inf
    %320 = vmax.xlane.f32.xlu0 %v319
    %v321 = vpop.xlane.xlu0 %320
    %v322 = vsel %vm312, %v310, -inf
    %323 = vmax.xlane.f32.xlu0 %v322
    %v324 = vpop.xlane.xlu0 %323
    %v325 = vsub.f32 %v301, %v315
    %v326 = vsub.f32 %v304, %v318
    %v327 = vsub.f32 %v307, %v321
    %v328 = vsub.f32 %v310, %v324
    %v329 = vmul.f32 %v325, 1.442695
    %v330 = vpow.pop %v329
    %v331 = vmul.f32 %v326, 1.442695
    %v332 = vpow.pop %v331
    %v333 = vmul.f32 %v327, 1.442695
    %v334 = vpow.pop %v333
    %v335 = vmul.f32 %v328, 1.442695
    %v336 = vpow.pop %v335
    %v337 = vsel %vm312, %v330, 0.0
    %338 = vadd.xlane.f32.xlu0 %v337
    %v339 = vpop.xlane.xlu0 %338
    %v340 = vsel %vm312, %v332, 0.0
    %341 = vadd.xlane.f32.xlu0 %v340
    %v342 = vpop.xlane.xlu0 %341
    %v343 = vsel %vm312, %v334, 0.0
    %344 = vadd.xlane.f32.xlu0 %v343
    %v345 = vpop.xlane.xlu0 %344
    %v346 = vsel %vm312, %v336, 0.0
    %347 = vadd.xlane.f32.xlu0 %v346
    %v348 = vpop.xlane.xlu0 %347
    %v349 = vrcp.pop %v339
    %v350 = vmul.f32 %v339, %v349
    %v351 = vsub.f32 1.0, %v350
    %v352 = vmul.f32 %v349, %v351
    %v353 = vadd.f32 %v349, %v352
    %vm354 = vweird.f32 %v339
    %vm355 = vweird.f32 %v349
    %vm356 = vmor %vm354, %vm355
    %v357 = vsel %vm356, %v349, %v353
    %v358 = vand.u32 2147483647, %v339
    %vm359 = vcmp.eq.f32.partialorder %v358, 8.507059e+37
    %v360 = vand.u32 %v339, 2147483648
    %v361 = vor.u32 1.1754944e-38, %v360
    %v362 = vsel %vm359, %v361, %v357
    %v363 = vmul.f32 %v330, %v362
    %v364 = vrcp.pop %v342
    %v365 = vmul.f32 %v342, %v364
    %v366 = vsub.f32 1.0, %v365
    %v367 = vmul.f32 %v364, %v366
    %v368 = vadd.f32 %v364, %v367
    %vm369 = vweird.f32 %v342
    %vm370 = vweird.f32 %v364
    %vm371 = vmor %vm369, %vm370
    %v372 = vsel %vm371, %v364, %v368
    %v373 = vand.u32 2147483647, %v342
    %vm374 = vcmp.eq.f32.partialorder %v373, 8.507059e+37
    %v375 = vand.u32 %v342, 2147483648
    %v376 = vor.u32 1.1754944e-38, %v375
    %v377 = vsel %vm374, %v376, %v372
    %v378 = vmul.f32 %v332, %v377
    %v379 = vrcp.pop %v345
    %v380 = vmul.f32 %v345, %v379
    %v381 = vsub.f32 1.0, %v380
    %v382 = vmul.f32 %v379, %v381
    %v383 = vadd.f32 %v379, %v382
    %vm384 = vweird.f32 %v345
    %vm385 = vweird.f32 %v379
    %vm386 = vmor %vm384, %vm385
    %v387 = vsel %vm386, %v379, %v383
    %v388 = vand.u32 2147483647, %v345
    %vm389 = vcmp.eq.f32.partialorder %v388, 8.507059e+37
    %v390 = vand.u32 %v345, 2147483648
    %v391 = vor.u32 1.1754944e-38, %v390
    %v392 = vsel %vm389, %v391, %v387
    %v393 = vmul.f32 %v334, %v392
    %v394 = vrcp.pop %v348
    %v395 = vmul.f32 %v348, %v394
    %v396 = vsub.f32 1.0, %v395
    %v397 = vmul.f32 %v394, %v396
    %v398 = vadd.f32 %v394, %v397
    %vm399 = vweird.f32 %v348
    %vm400 = vweird.f32 %v394
    %vm401 = vmor %vm399, %vm400
    %v402 = vsel %vm401, %v394, %v398
    %v403 = vand.u32 2147483647, %v348
    %vm404 = vcmp.eq.f32.partialorder %v403, 8.507059e+37
    %v405 = vand.u32 %v348, 2147483648
    %v406 = vor.u32 1.1754944e-38, %v405
    %v407 = vsel %vm404, %v406, %v402
    %v408 = vmul.f32 %v336, %v407
    %v409 = vld [vmem:[%s6] sm:$0xff]
    %v410 = vld [vmem:[%s6 + $0x8] sm:$0xff]
    %v411 = vld [vmem:[%s6 + $0x10] sm:$0xff]
    %v412 = vld [vmem:[%s6 + $0x18] sm:$0xff]
    %v414 = vsel %vm122, %v409, 0
    %v417 = vsel %vm122, %v410, 0
    %v420 = vsel %vm122, %v411, 0
    %v423 = vsel %vm122, %v412, 0
    %425 = vmatpush.msra.mxu0 0.0
    %426 = vmatpush.msra.mxu0 0.0
    %427 = vmatpush.msra.mxu0 0.0
    %428 = vmatpush.msra.mxu0 0.0
    %429 = vmatpush.msra.mxu0 0.0
    %430 = vmatpush.msra.mxu0 0.0
    %431 = vmatpush.msra.mxu0 0.0
    %432 = vmatpush.msra.mxu0 0.0
    %433 = vmatpush.msra.mxu0 0.0
    %434 = vmatpush.msra.mxu0 0.0
    %435 = vmatpush.msra.mxu0 0.0
    %436 = vmatpush.msra.mxu0 0.0
    %437 = vmatpush.msra.mxu0 %v408
    %438 = vmatpush.msra.mxu0 %v393
    %439 = vmatpush.msra.mxu0 %v378
    %440 = vmatpush.msra.mxu0 %v363
    %441 = vmatmul.f32.gmra.mxu0 %v414
    %v442 = vpop.f32.mrf.mxu0
    %v443 = vadd.f32 0.0, %v442
    %444 = vmatmul.f32.gmra.mxu0 %v417
    %v445 = vpop.f32.mrf.mxu0
    %v446 = vadd.f32 0.0, %v445
    %447 = vmatmul.f32.gmra.mxu0 %v420
    %v448 = vpop.f32.mrf.mxu0
    %v449 = vadd.f32 0.0, %v448
    %450 = vmatmul.f32.gmra.mxu0 %v423
    %v451 = vpop.f32.mrf.mxu0
    %v452 = vadd.f32 0.0, %v451
    %453 = vdwg.mxu0
    %454 = vrot.lane.b32.xlu0 %v212, 64
    %v455 = vpop.permute.xlu0 %454
    %v458 = vsel %vm312, %v443, 0
    %v461 = vsel %vm312, %v446, 0
    %v464 = vsel %vm312, %v449, 0
    %v467 = vsel %vm312, %v452, 0
    %469 = vmatpush.msra.mxu0 0.0
    %470 = vmatpush.msra.mxu0 0.0
    %471 = vmatpush.msra.mxu0 0.0
    %472 = vmatpush.msra.mxu0 0.0
    %473 = vmatpush.msra.mxu0 0.0
    %474 = vmatpush.msra.mxu0 0.0
    %475 = vmatpush.msra.mxu0 0.0
    %476 = vmatpush.msra.mxu0 0.0
    %477 = vmatpush.msra.mxu0 0.0
    %478 = vmatpush.msra.mxu0 0.0
    %479 = vmatpush.msra.mxu0 0.0
    %480 = vmatpush.msra.mxu0 0.0
    %481 = vmatpush.msra.mxu0 0.0
    %482 = vmatpush.msra.mxu0 0.0
    %483 = vmatpush.msra.mxu0 0.0
    %484 = vmatpush.msra.mxu0 %v455
    %485 = vmatmul.f32.gmra.mxu0 %v458
    %v486 = vpop.f32.mrf.mxu0
    %v487 = vadd.f32 0.0, %v486
    %488 = vmatmul.f32.gmra.mxu0 %v461
    %v489 = vpop.f32.mrf.mxu0
    %v490 = vadd.f32 0.0, %v489
    %491 = vmatmul.f32.gmra.mxu0 %v464
    %v492 = vpop.f32.mrf.mxu0
    %v493 = vadd.f32 0.0, %v492
    %494 = vmatmul.f32.gmra.mxu0 %v467
    %v495 = vpop.f32.mrf.mxu0
    %v496 = vadd.f32 0.0, %v495
    %497 = vdwg.mxu0
    %v498 = vmul.f32 %v487, %v116
    %v499 = vmul.f32 %v490, %v117
    %v500 = vmul.f32 %v493, %v118
    %v501 = vmul.f32 %v496, %v119
    %v502 = vadd.f32 %v498, %v499
    %v503 = vadd.f32 %v502, %v500
    %v504 = vadd.f32 %v503, %v501
    %v505 = vmul.f32 %v215, %v116
    %v506 = vmul.f32 %v215, %v117
    %v507 = vmul.f32 %v215, %v118
    %v508 = vmul.f32 %v215, %v119
    %510 = vrot.lane.b32.xlu0 %v215, 96
    %v511 = vpop.permute.xlu0 %510
    %v513 = vsel %vm122, %v505, 0
    %v516 = vsel %vm122, %v506, 0
    %v519 = vsel %vm122, %v507, 0
    %v522 = vsel %vm122, %v508, 0
    %v524 = vsel %vm122, %v511, 0
    %526 = vmatpush.xpose.msra.mxu0 0.0
    %527 = vmatpush.xpose.msra.mxu0 0.0
    %528 = vmatpush.xpose.msra.mxu0 0.0
    %529 = vmatpush.xpose.msra.mxu0 0.0
    %530 = vmatpush.xpose.msra.mxu0 0.0
    %531 = vmatpush.xpose.msra.mxu0 0.0
    %532 = vmatpush.xpose.msra.mxu0 0.0
    %533 = vmatpush.xpose.msra.mxu0 0.0
    %534 = vmatpush.xpose.msra.mxu0 0.0
    %535 = vmatpush.xpose.msra.mxu0 0.0
    %536 = vmatpush.xpose.msra.mxu0 0.0
    %537 = vmatpush.xpose.msra.mxu0 0.0
    %538 = vmatpush.xpose.msra.mxu0 0.0
    %539 = vmatpush.xpose.msra.mxu0 0.0
    %540 = vmatpush.xpose.msra.mxu0 0.0
    %541 = vmatpush.xpose.msra.mxu0 %v524
    %542 = vmatmul.f32.gmra.mxu0 %v513
    %v543 = vpop.f32.mrf.mxu0
    %v544 = vadd.f32 0.0, %v543
    %545 = vmatmul.f32.gmra.mxu0 %v516
    %v546 = vpop.f32.mrf.mxu0
    %v547 = vadd.f32 0.0, %v546
    %548 = vmatmul.f32.gmra.mxu0 %v519
    %v549 = vpop.f32.mrf.mxu0
    %v550 = vadd.f32 0.0, %v549
    %551 = vmatmul.f32.gmra.mxu0 %v522
    %v552 = vpop.f32.mrf.mxu0
    %v553 = vadd.f32 0.0, %v552
    %554 = vdwg.mxu0
    %555 = vmatpush.msra.mxu0 0.0
    %556 = vmatpush.msra.mxu0 0.0
    %557 = vmatpush.msra.mxu0 0.0
    %558 = vmatpush.msra.mxu0 0.0
    %559 = vmatpush.msra.mxu0 0.0
    %560 = vmatpush.msra.mxu0 0.0
    %561 = vmatpush.msra.mxu0 0.0
    %562 = vmatpush.msra.mxu0 0.0
    %563 = vmatpush.msra.mxu0 0.0
    %564 = vmatpush.msra.mxu0 0.0
    %565 = vmatpush.msra.mxu0 0.0
    %566 = vmatpush.msra.mxu0 0.0
    %567 = vmatpush.msra.mxu0 %v553
    %568 = vmatpush.msra.mxu0 %v550
    %569 = vmatpush.msra.mxu0 %v547
    %570 = vmatpush.msra.mxu0 %v544
    %571 = vmatmul.f32.gmra.mxu0 %v272
    %v572 = vpop.f32.mrf.mxu0
    %v573 = vadd.f32 0.0, %v572
    %574 = vmatmul.f32.gmra.mxu0 %v275
    %v575 = vpop.f32.mrf.mxu0
    %v576 = vadd.f32 0.0, %v575
    %577 = vmatmul.f32.gmra.mxu0 %v278
    %v578 = vpop.f32.mrf.mxu0
    %v579 = vadd.f32 0.0, %v578
    %580 = vmatmul.f32.gmra.mxu0 %v281
    %v581 = vpop.f32.mrf.mxu0
    %v582 = vadd.f32 0.0, %v581
    %583 = vdwg.mxu0
    %v584 = vsel %vm312, %v573, -inf
    %585 = vmax.xlane.f32.xlu0 %v584
    %v586 = vpop.xlane.xlu0 %585
    %v587 = vsel %vm312, %v576, -inf
    %588 = vmax.xlane.f32.xlu0 %v587
    %v589 = vpop.xlane.xlu0 %588
    %v590 = vsel %vm312, %v579, -inf
    %591 = vmax.xlane.f32.xlu0 %v590
    %v592 = vpop.xlane.xlu0 %591
    %v593 = vsel %vm312, %v582, -inf
    %594 = vmax.xlane.f32.xlu0 %v593
    %v595 = vpop.xlane.xlu0 %594
    %v596 = vsub.f32 %v573, %v586
    %v597 = vsub.f32 %v576, %v589
    %v598 = vsub.f32 %v579, %v592
    %v599 = vsub.f32 %v582, %v595
    %v600 = vmul.f32 %v596, 1.442695
    %v601 = vpow.pop %v600
    %v602 = vmul.f32 %v597, 1.442695
    %v603 = vpow.pop %v602
    %v604 = vmul.f32 %v598, 1.442695
    %v605 = vpow.pop %v604
    %v606 = vmul.f32 %v599, 1.442695
    %v607 = vpow.pop %v606
    %v608 = vsel %vm312, %v601, 0.0
    %609 = vadd.xlane.f32.xlu0 %v608
    %v610 = vpop.xlane.xlu0 %609
    %v611 = vsel %vm312, %v603, 0.0
    %612 = vadd.xlane.f32.xlu0 %v611
    %v613 = vpop.xlane.xlu0 %612
    %v614 = vsel %vm312, %v605, 0.0
    %615 = vadd.xlane.f32.xlu0 %v614
    %v616 = vpop.xlane.xlu0 %615
    %v617 = vsel %vm312, %v607, 0.0
    %618 = vadd.xlane.f32.xlu0 %v617
    %v619 = vpop.xlane.xlu0 %618
    %v620 = vrcp.pop %v610
    %v621 = vmul.f32 %v610, %v620
    %v622 = vsub.f32 1.0, %v621
    %v623 = vmul.f32 %v620, %v622
    %v624 = vadd.f32 %v620, %v623
    %vm625 = vweird.f32 %v610
    %vm626 = vweird.f32 %v620
    %vm627 = vmor %vm625, %vm626
    %v628 = vsel %vm627, %v620, %v624
    %v629 = vand.u32 2147483647, %v610
    %vm630 = vcmp.eq.f32.partialorder %v629, 8.507059e+37
    %v631 = vand.u32 %v610, 2147483648
    %v632 = vor.u32 1.1754944e-38, %v631
    %v633 = vsel %vm630, %v632, %v628
    %v634 = vmul.f32 %v601, %v633
    %v635 = vrcp.pop %v613
    %v636 = vmul.f32 %v613, %v635
    %v637 = vsub.f32 1.0, %v636
    %v638 = vmul.f32 %v635, %v637
    %v639 = vadd.f32 %v635, %v638
    %vm640 = vweird.f32 %v613
    %vm641 = vweird.f32 %v635
    %vm642 = vmor %vm640, %vm641
    %v643 = vsel %vm642, %v635, %v639
    %v644 = vand.u32 2147483647, %v613
    %vm645 = vcmp.eq.f32.partialorder %v644, 8.507059e+37
    %v646 = vand.u32 %v613, 2147483648
    %v647 = vor.u32 1.1754944e-38, %v646
    %v648 = vsel %vm645, %v647, %v643
    %v649 = vmul.f32 %v603, %v648
    %v650 = vrcp.pop %v616
    %v651 = vmul.f32 %v616, %v650
    %v652 = vsub.f32 1.0, %v651
    %v653 = vmul.f32 %v650, %v652
    %v654 = vadd.f32 %v650, %v653
    %vm655 = vweird.f32 %v616
    %vm656 = vweird.f32 %v650
    %vm657 = vmor %vm655, %vm656
    %v658 = vsel %vm657, %v650, %v654
    %v659 = vand.u32 2147483647, %v616
    %vm660 = vcmp.eq.f32.partialorder %v659, 8.507059e+37
    %v661 = vand.u32 %v616, 2147483648
    %v662 = vor.u32 1.1754944e-38, %v661
    %v663 = vsel %vm660, %v662, %v658
    %v664 = vmul.f32 %v605, %v663
    %v665 = vrcp.pop %v619
    %v666 = vmul.f32 %v619, %v665
    %v667 = vsub.f32 1.0, %v666
    %v668 = vmul.f32 %v665, %v667
    %v669 = vadd.f32 %v665, %v668
    %vm670 = vweird.f32 %v619
    %vm671 = vweird.f32 %v665
    %vm672 = vmor %vm670, %vm671
    %v673 = vsel %vm672, %v665, %v669
    %v674 = vand.u32 2147483647, %v619
    %vm675 = vcmp.eq.f32.partialorder %v674, 8.507059e+37
    %v676 = vand.u32 %v619, 2147483648
    %v677 = vor.u32 1.1754944e-38, %v676
    %v678 = vsel %vm675, %v677, %v673
    %v679 = vmul.f32 %v607, %v678
    %680 = vmatpush.msra.mxu0 0.0
    %681 = vmatpush.msra.mxu0 0.0
    %682 = vmatpush.msra.mxu0 0.0
    %683 = vmatpush.msra.mxu0 0.0
    %684 = vmatpush.msra.mxu0 0.0
    %685 = vmatpush.msra.mxu0 0.0
    %686 = vmatpush.msra.mxu0 0.0
    %687 = vmatpush.msra.mxu0 0.0
    %688 = vmatpush.msra.mxu0 0.0
    %689 = vmatpush.msra.mxu0 0.0
    %690 = vmatpush.msra.mxu0 0.0
    %691 = vmatpush.msra.mxu0 0.0
    %692 = vmatpush.msra.mxu0 %v679
    %693 = vmatpush.msra.mxu0 %v664
    %694 = vmatpush.msra.mxu0 %v649
    %695 = vmatpush.msra.mxu0 %v634
    %696 = vmatmul.f32.gmra.mxu0 %v414
    %v697 = vpop.f32.mrf.mxu0
    %v698 = vadd.f32 0.0, %v697
    %699 = vmatmul.f32.gmra.mxu0 %v417
    %v700 = vpop.f32.mrf.mxu0
    %v701 = vadd.f32 0.0, %v700
    %702 = vmatmul.f32.gmra.mxu0 %v420
    %v703 = vpop.f32.mrf.mxu0
    %v704 = vadd.f32 0.0, %v703
    %705 = vmatmul.f32.gmra.mxu0 %v423
    %v706 = vpop.f32.mrf.mxu0
    %v707 = vadd.f32 0.0, %v706
    %708 = vdwg.mxu0
    %709 = vrot.lane.b32.xlu0 %v215, 64
    %v710 = vpop.permute.xlu0 %709
    %v713 = vsel %vm312, %v698, 0
    %v716 = vsel %vm312, %v701, 0
    %v719 = vsel %vm312, %v704, 0
    %v722 = vsel %vm312, %v707, 0
    %724 = vmatpush.msra.mxu0 0.0
    %725 = vmatpush.msra.mxu0 0.0
    %726 = vmatpush.msra.mxu0 0.0
    %727 = vmatpush.msra.mxu0 0.0
    %728 = vmatpush.msra.mxu0 0.0
    %729 = vmatpush.msra.mxu0 0.0
    %730 = vmatpush.msra.mxu0 0.0
    %731 = vmatpush.msra.mxu0 0.0
    %732 = vmatpush.msra.mxu0 0.0
    %733 = vmatpush.msra.mxu0 0.0
    %734 = vmatpush.msra.mxu0 0.0
    %735 = vmatpush.msra.mxu0 0.0
    %736 = vmatpush.msra.mxu0 0.0
    %737 = vmatpush.msra.mxu0 0.0
    %738 = vmatpush.msra.mxu0 0.0
    %739 = vmatpush.msra.mxu0 %v710
    %740 = vmatmul.f32.gmra.mxu0 %v713
    %v741 = vpop.f32.mrf.mxu0
    %v742 = vadd.f32 0.0, %v741
    %743 = vmatmul.f32.gmra.mxu0 %v716
    %v744 = vpop.f32.mrf.mxu0
    %v745 = vadd.f32 0.0, %v744
    %746 = vmatmul.f32.gmra.mxu0 %v719
    %v747 = vpop.f32.mrf.mxu0
    %v748 = vadd.f32 0.0, %v747
    %749 = vmatmul.f32.gmra.mxu0 %v722
    %v750 = vpop.f32.mrf.mxu0
    %v751 = vadd.f32 0.0, %v750
    %752 = vdwg.mxu0
    %v753 = vmul.f32 %v742, %v116
    %v754 = vmul.f32 %v745, %v117
    %v755 = vmul.f32 %v748, %v118
    %v756 = vmul.f32 %v751, %v119
    %v757 = vadd.f32 %v753, %v754
    %v758 = vadd.f32 %v757, %v755
    %v759 = vadd.f32 %v758, %v756
    %v760 = vld [vmem:[%s7] sm:$0xff]
    %v761 = vld [vmem:[%s7 + $0x8] sm:$0xff]
    %v762 = vld [vmem:[%s7 + $0x10] sm:$0xff]
    %v763 = vld [vmem:[%s7 + $0x18] sm:$0xff]
    %v764 = vld [vmem:[%s8] sm:$0x1]
    %v766 = vperm.slane %v764, 0
    %v769 = vsel %vm122, %v504, 0
    %v772 = vsel %vm122, %v759, 0
    %774 = vmatpush.msra.mxu0 0.0
    %775 = vmatpush.msra.mxu0 0.0
    %776 = vmatpush.msra.mxu0 0.0
    %777 = vmatpush.msra.mxu0 0.0
    %778 = vmatpush.msra.mxu0 0.0
    %779 = vmatpush.msra.mxu0 0.0
    %780 = vmatpush.msra.mxu0 0.0
    %781 = vmatpush.msra.mxu0 0.0
    %782 = vmatpush.msra.mxu0 0.0
    %783 = vmatpush.msra.mxu0 0.0
    %784 = vmatpush.msra.mxu0 0.0
    %785 = vmatpush.msra.mxu0 0.0
    %786 = vmatpush.msra.mxu0 %v763
    %787 = vmatpush.msra.mxu0 %v762
    %788 = vmatpush.msra.mxu0 %v761
    %789 = vmatpush.msra.mxu0 %v760
    %790 = vmatmul.f32.gmra.mxu0 %v769
    %v791 = vpop.f32.mrf.mxu0
    %v792 = vadd.f32 %v766, %v791
    %793 = vmatmul.f32.gmra.mxu0 %v772
    %v794 = vpop.f32.mrf.mxu0
    %v795 = vadd.f32 %v766, %v794
    %796 = vdwg.mxu0
    %v797 = vadd.f32 %v792, %v114
    %v798 = vadd.f32 %v795, %v115
    %v799 = vld [vmem:[%s9] sm:$0x1]
    %v800 = vld [vmem:[%s10] sm:$0x1]
    %v801 = vsel %vm122, %v797, 0.0
    %802 = vadd.xlane.f32.xlu0 %v801
    %v803 = vpop.xlane.xlu0 %802
    %v804 = vsel %vm122, %v798, 0.0
    %805 = vadd.xlane.f32.xlu0 %v804
    %v806 = vpop.xlane.xlu0 %805
    %v807 = vmul.f32 %v803, %v135
    %v808 = vmul.f32 %v806, %v135
    %v809 = vsub.f32 %v797, %v807
    %v810 = vsub.f32 %v798, %v808
    %v811 = vmul.f32 %v809, %v809
    %v812 = vmul.f32 %v810, %v810
    %v813 = vsel %vm122, %v811, 0.0
    %814 = vadd.xlane.f32.xlu0 %v813
    %v815 = vpop.xlane.xlu0 %814
    %v816 = vsel %vm122, %v812, 0.0
    %817 = vadd.xlane.f32.xlu0 %v816
    %v818 = vpop.xlane.xlu0 %817
    %v819 = vmul.f32 %v815, %v135
    %v820 = vmul.f32 %v818, %v135
    %v821 = vadd.f32 %v819, 1e-05
    %v822 = vadd.f32 %v820, 1e-05
    %v823 = vrsqrt.pop %v821
    %v824 = vmul.f32 %v823, %v821
    %v825 = vmul.f32 %v824, %v823
    %v826 = vmul.f32 0.5, %v825
    %v827 = vsub.f32 1.5, %v826
    %v828 = vmul.f32 %v823, %v827
    %vm829 = vweird.f32 %v821
    %vm830 = vweird.f32 %v823
    %vm831 = vmor %vm829, %vm830
    %v832 = vsel %vm831, %v823, %v828
    %v833 = vrsqrt.pop %v822
    %v834 = vmul.f32 %v833, %v822
    %v835 = vmul.f32 %v834, %v833
    %v836 = vmul.f32 0.5, %v835
    %v837 = vsub.f32 1.5, %v836
    %v838 = vmul.f32 %v833, %v837
    %vm839 = vweird.f32 %v822
    %vm840 = vweird.f32 %v833
    %vm841 = vmor %vm839, %vm840
    %v842 = vsel %vm841, %v833, %v838
    %v843 = vmul.f32 %v809, %v832
    %v844 = vmul.f32 %v810, %v842
    %v846 = vperm.slane %v799, 0
    %v848 = vmul.f32 %v843, %v846
    %v849 = vmul.f32 %v844, %v846
    %v851 = vperm.slane %v800, 0
    %v853 = vadd.f32 %v848, %v851
    %v854 = vadd.f32 %v849, %v851
    %v855 = vld [vmem:[%s11] sm:$0xff]
    %v856 = vld [vmem:[%s11 + $0x8] sm:$0xff]
    %v857 = vld [vmem:[%s11 + $0x10] sm:$0xff]
    %v858 = vld [vmem:[%s11 + $0x18] sm:$0xff]
    %v859 = vld [vmem:[%s12] sm:$0x1]
    %v861 = vperm.slane %v859, 0
    %v864 = vsel %vm122, %v853, 0
    %v867 = vsel %vm122, %v854, 0
    %869 = vmatpush.msra.mxu0 0.0
    %870 = vmatpush.msra.mxu0 0.0
    %871 = vmatpush.msra.mxu0 0.0
    %872 = vmatpush.msra.mxu0 0.0
    %873 = vmatpush.msra.mxu0 0.0
    %874 = vmatpush.msra.mxu0 0.0
    %875 = vmatpush.msra.mxu0 0.0
    %876 = vmatpush.msra.mxu0 0.0
    %877 = vmatpush.msra.mxu0 0.0
    %878 = vmatpush.msra.mxu0 0.0
    %879 = vmatpush.msra.mxu0 0.0
    %880 = vmatpush.msra.mxu0 0.0
    %881 = vmatpush.msra.mxu0 %v858
    %882 = vmatpush.msra.mxu0 %v857
    %883 = vmatpush.msra.mxu0 %v856
    %884 = vmatpush.msra.mxu0 %v855
    %885 = vmatmul.f32.gmra.mxu0 %v864
    %v886 = vpop.f32.mrf.mxu0
    %v887 = vadd.f32 %v861, %v886
    %888 = vmatmul.f32.gmra.mxu0 %v867
    %v889 = vpop.f32.mrf.mxu0
    %v890 = vadd.f32 %v861, %v889
    %891 = vdwg.mxu0
    %v892 = vmul.f32 %v887, 0.5
    %v893 = vmul.f32 %v890, 0.5
    %v894 = vmul.f32 %v887, 0.70710677
    %v895 = vmul.f32 %v890, 0.70710677
    %v896 = vand.u32 2147483647, %v894
    %v897 = vand.u32 2147483647, %v895
    %v898 = vmul.f32 %v896, 0.3275911
    %v899 = vmul.f32 %v897, 0.3275911
    %v900 = vadd.f32 %v898, 1.0
    %v901 = vadd.f32 %v899, 1.0
    %v902 = vrcp.pop %v900
    %v903 = vmul.f32 %v900, %v902
    %v904 = vsub.f32 1.0, %v903
    %v905 = vmul.f32 %v902, %v904
    %v906 = vadd.f32 %v902, %v905
    %vm907 = vweird.f32 %v900
    %vm908 = vweird.f32 %v902
    %vm909 = vmor %vm907, %vm908
    %v910 = vsel %vm909, %v902, %v906
    %v911 = vand.u32 2147483647, %v900
    %vm912 = vcmp.eq.f32.partialorder %v911, 8.507059e+37
    %v913 = vand.u32 %v900, 2147483648
    %v914 = vor.u32 1.1754944e-38, %v913
    %v915 = vsel %vm912, %v914, %v910
    %v916 = vmul.f32 1.0, %v915
    %v917 = vrcp.pop %v901
    %v918 = vmul.f32 %v901, %v917
    %v919 = vsub.f32 1.0, %v918
    %v920 = vmul.f32 %v917, %v919
    %v921 = vadd.f32 %v917, %v920
    %vm922 = vweird.f32 %v901
    %vm923 = vweird.f32 %v917
    %vm924 = vmor %vm922, %vm923
    %v925 = vsel %vm924, %v917, %v921
    %v926 = vand.u32 2147483647, %v901
    %vm927 = vcmp.eq.f32.partialorder %v926, 8.507059e+37
    %v928 = vand.u32 %v901, 2147483648
    %v929 = vor.u32 1.1754944e-38, %v928
    %v930 = vsel %vm927, %v929, %v925
    %v931 = vmul.f32 1.0, %v930
    %v932 = vmul.f32 %v916, 1.0614054
    %v933 = vmul.f32 %v931, 1.0614054
    %v934 = vadd.f32 %v932, -1.4531521
    %v935 = vadd.f32 %v933, -1.4531521
    %v936 = vmul.f32 %v934, %v916
    %v937 = vmul.f32 %v935, %v931
    %v938 = vadd.f32 %v936, 1.4214138
    %v939 = vadd.f32 %v937, 1.4214138
    %v940 = vmul.f32 %v938, %v916
    %v941 = vmul.f32 %v939, %v931
    %v942 = vadd.f32 %v940, -0.28449672
    %v943 = vadd.f32 %v941, -0.28449672
    %v944 = vmul.f32 %v942, %v916
    %v945 = vmul.f32 %v943, %v931
    %v946 = vadd.f32 %v944, 0.2548296
    %v947 = vadd.f32 %v945, 0.2548296
    %v948 = vmul.f32 %v946, %v916
    %v949 = vmul.f32 %v947, %v931
    %v950 = vsub.f32 0.0, %v896
    %v951 = vsub.f32 0.0, %v897
    %v952 = vmul.f32 %v950, %v896
    %v953 = vmul.f32 %v951, %v897
    %v954 = vmul.f32 %v952, 1.442695
    %v955 = vpow.pop %v954
    %v956 = vmul.f32 %v953, 1.442695
    %v957 = vpow.pop %v956
    %v958 = vmul.f32 %v948, %v955
    %v959 = vmul.f32 %v949, %v957
    %v960 = vsub.f32 1.0, %v958
    %v961 = vsub.f32 1.0, %v959
    %vm962 = vcmp.ge.f32.partialorder %v894, 0.0
    %vm963 = vcmp.ge.f32.partialorder %v895, 0.0
    %v964 = vsub.f32 0.0, %v960
    %v965 = vsub.f32 0.0, %v961
    %v966 = vsel %vm962, %v960, %v964
    %v967 = vsel %vm963, %v961, %v965
    %v968 = vadd.f32 %v966, 1.0
    %v969 = vadd.f32 %v967, 1.0
    %v970 = vmul.f32 %v892, %v968
    %v971 = vmul.f32 %v893, %v969
    %v972 = vld [vmem:[%s13] sm:$0xff]
    %v973 = vld [vmem:[%s13 + $0x8] sm:$0xff]
    %v974 = vld [vmem:[%s13 + $0x10] sm:$0xff]
    %v975 = vld [vmem:[%s13 + $0x18] sm:$0xff]
    %v976 = vld [vmem:[%s13 + $0x20] sm:$0xff]
    %v977 = vld [vmem:[%s13 + $0x28] sm:$0xff]
    %v978 = vld [vmem:[%s13 + $0x30] sm:$0xff]
    %v979 = vld [vmem:[%s13 + $0x38] sm:$0xff]
    %v980 = vld [vmem:[%s13 + $0x40] sm:$0xff]
    %v981 = vld [vmem:[%s13 + $0x48] sm:$0xff]
    %v982 = vld [vmem:[%s13 + $0x50] sm:$0xff]
    %v983 = vld [vmem:[%s13 + $0x58] sm:$0xff]
    %v984 = vld [vmem:[%s13 + $0x60] sm:$0xff]
    %v985 = vld [vmem:[%s13 + $0x68] sm:$0xff]
    %v986 = vld [vmem:[%s13 + $0x70] sm:$0xff]
    %v987 = vld [vmem:[%s13 + $0x78] sm:$0xff]
    %v988 = vld [vmem:[%s14] sm:$0x1]
    %v990 = vperm.slane %v988, 0
    %992 = vmatpush.msra.mxu0 %v987
    %993 = vmatpush.msra.mxu0 %v986
    %994 = vmatpush.msra.mxu0 %v985
    %995 = vmatpush.msra.mxu0 %v984
    %996 = vmatpush.msra.mxu0 %v983
    %997 = vmatpush.msra.mxu0 %v982
    %998 = vmatpush.msra.mxu0 %v981
    %999 = vmatpush.msra.mxu0 %v980
    %1000 = vmatpush.msra.mxu0 %v979
    %1001 = vmatpush.msra.mxu0 %v978
    %1002 = vmatpush.msra.mxu0 %v977
    %1003 = vmatpush.msra.mxu0 %v976
    %1004 = vmatpush.msra.mxu0 %v975
    %1005 = vmatpush.msra.mxu0 %v974
    %1006 = vmatpush.msra.mxu0 %v973
    %1007 = vmatpush.msra.mxu0 %v972
    %1008 = vmatmul.f32.gmra.mxu0 %v970
    %v1009 = vpop.f32.mrf.mxu0
    %v1010 = vadd.f32 %v990, %v1009
    %1011 = vmatmul.f32.gmra.mxu0 %v971
    %v1012 = vpop.f32.mrf.mxu0
    %v1013 = vadd.f32 %v990, %v1012
    %1014 = vdwg.mxu0
    %v1015 = vadd.f32 %v1010, %v797
    %v1016 = vadd.f32 %v1013, %v798
    %s1017 = scalar_lea.vmem [#allocation7], 1
    %v1018 = vld [vmem:[%s1017] sm:$0x1]
    %s1019 = scalar_lea.vmem [#allocation8], 1
    %v1020 = vld [vmem:[%s1019] sm:$0x1]
    %v1021 = vsel %vm122, %v1015, 0.0
    %1022 = vadd.xlane.f32.xlu0 %v1021
    %v1023 = vpop.xlane.xlu0 %1022
    %v1024 = vsel %vm122, %v1016, 0.0
    %1025 = vadd.xlane.f32.xlu0 %v1024
    %v1026 = vpop.xlane.xlu0 %1025
    %v1027 = vmul.f32 %v1023, %v135
    %v1028 = vmul.f32 %v1026, %v135
    %v1029 = vsub.f32 %v1015, %v1027
    %v1030 = vsub.f32 %v1016, %v1028
    %v1031 = vmul.f32 %v1029, %v1029
    %v1032 = vmul.f32 %v1030, %v1030
    %v1033 = vsel %vm122, %v1031, 0.0
    %1034 = vadd.xlane.f32.xlu0 %v1033
    %v1035 = vpop.xlane.xlu0 %1034
    %v1036 = vsel %vm122, %v1032, 0.0
    %1037 = vadd.xlane.f32.xlu0 %v1036
    %v1038 = vpop.xlane.xlu0 %1037
    %v1039 = vmul.f32 %v1035, %v135
    %v1040 = vmul.f32 %v1038, %v135
    %v1041 = vadd.f32 %v1039, 1e-05
    %v1042 = vadd.f32 %v1040, 1e-05
    %v1043 = vrsqrt.pop %v1041
    %v1044 = vmul.f32 %v1043, %v1041
    %v1045 = vmul.f32 %v1044, %v1043
    %v1046 = vmul.f32 0.5, %v1045
    %v1047 = vsub.f32 1.5, %v1046
    %v1048 = vmul.f32 %v1043, %v1047
    %vm1049 = vweird.f32 %v1041
    %vm1050 = vweird.f32 %v1043
    %vm1051 = vmor %vm1049, %vm1050
    %v1052 = vsel %vm1051, %v1043, %v1048
    %v1053 = vrsqrt.pop %v1042
    %v1054 = vmul.f32 %v1053, %v1042
    %v1055 = vmul.f32 %v1054, %v1053
    %v1056 = vmul.f32 0.5, %v1055
    %v1057 = vsub.f32 1.5, %v1056
    %v1058 = vmul.f32 %v1053, %v1057
    %vm1059 = vweird.f32 %v1042
    %vm1060 = vweird.f32 %v1053
    %vm1061 = vmor %vm1059, %vm1060
    %v1062 = vsel %vm1061, %v1053, %v1058
    %v1063 = vmul.f32 %v1029, %v1052
    %v1064 = vmul.f32 %v1030, %v1062
    %v1066 = vperm.slane %v1018, 0
    %v1068 = vmul.f32 %v1063, %v1066
    %v1069 = vmul.f32 %v1064, %v1066
    %v1071 = vperm.slane %v1020, 0
    %v1073 = vadd.f32 %v1068, %v1071
    %v1074 = vadd.f32 %v1069, %v1071
    %s1075 = scalar_lea.vmem %s4, 32
    %v1076 = vld [vmem:[%s1075] sm:$0xff]
    %v1077 = vld [vmem:[%s1075 + $0x8] sm:$0xff]
    %v1078 = vld [vmem:[%s1075 + $0x10] sm:$0xff]
    %v1079 = vld [vmem:[%s1075 + $0x18] sm:$0xff]
    %v1081 = vsel %vm122, %v1073, 0
    %v1084 = vsel %vm122, %v1074, 0
    %1086 = vmatpush.msra.mxu0 0.0
    %1087 = vmatpush.msra.mxu0 0.0
    %1088 = vmatpush.msra.mxu0 0.0
    %1089 = vmatpush.msra.mxu0 0.0
    %1090 = vmatpush.msra.mxu0 0.0
    %1091 = vmatpush.msra.mxu0 0.0
    %1092 = vmatpush.msra.mxu0 0.0
    %1093 = vmatpush.msra.mxu0 0.0
    %1094 = vmatpush.msra.mxu0 0.0
    %1095 = vmatpush.msra.mxu0 0.0
    %1096 = vmatpush.msra.mxu0 0.0
    %1097 = vmatpush.msra.mxu0 0.0
    %1098 = vmatpush.msra.mxu0 %v1079
    %1099 = vmatpush.msra.mxu0 %v1078
    %1100 = vmatpush.msra.mxu0 %v1077
    %1101 = vmatpush.msra.mxu0 %v1076
    %1102 = vmatmul.f32.gmra.mxu0 %v1081
    %v1103 = vpop.f32.mrf.mxu0
    %v1104 = vadd.f32 0.0, %v1103
    %1105 = vmatmul.f32.gmra.mxu0 %v1084
    %v1106 = vpop.f32.mrf.mxu0
    %v1107 = vadd.f32 0.0, %v1106
    %1108 = vdwg.mxu0
    %v1109 = vmul.f32 %v1104, %v116
    %v1110 = vmul.f32 %v1104, %v117
    %v1111 = vmul.f32 %v1104, %v118
    %v1112 = vmul.f32 %v1104, %v119
    %1114 = vrot.lane.b32.xlu0 %v1104, 96
    %v1115 = vpop.permute.xlu0 %1114
    %v1117 = vsel %vm122, %v1109, 0
    %v1120 = vsel %vm122, %v1110, 0
    %v1123 = vsel %vm122, %v1111, 0
    %v1126 = vsel %vm122, %v1112, 0
    %v1128 = vsel %vm122, %v1115, 0
    %1130 = vmatpush.xpose.msra.mxu0 0.0
    %1131 = vmatpush.xpose.msra.mxu0 0.0
    %1132 = vmatpush.xpose.msra.mxu0 0.0
    %1133 = vmatpush.xpose.msra.mxu0 0.0
    %1134 = vmatpush.xpose.msra.mxu0 0.0
    %1135 = vmatpush.xpose.msra.mxu0 0.0
    %1136 = vmatpush.xpose.msra.mxu0 0.0
    %1137 = vmatpush.xpose.msra.mxu0 0.0
    %1138 = vmatpush.xpose.msra.mxu0 0.0
    %1139 = vmatpush.xpose.msra.mxu0 0.0
    %1140 = vmatpush.xpose.msra.mxu0 0.0
    %1141 = vmatpush.xpose.msra.mxu0 0.0
    %1142 = vmatpush.xpose.msra.mxu0 0.0
    %1143 = vmatpush.xpose.msra.mxu0 0.0
    %1144 = vmatpush.xpose.msra.mxu0 0.0
    %1145 = vmatpush.xpose.msra.mxu0 %v1128
    %1146 = vmatmul.f32.gmra.mxu0 %v1117
    %v1147 = vpop.f32.mrf.mxu0
    %v1148 = vadd.f32 0.0, %v1147
    %1149 = vmatmul.f32.gmra.mxu0 %v1120
    %v1150 = vpop.f32.mrf.mxu0
    %v1151 = vadd.f32 0.0, %v1150
    %1152 = vmatmul.f32.gmra.mxu0 %v1123
    %v1153 = vpop.f32.mrf.mxu0
    %v1154 = vadd.f32 0.0, %v1153
    %1155 = vmatmul.f32.gmra.mxu0 %v1126
    %v1156 = vpop.f32.mrf.mxu0
    %v1157 = vadd.f32 0.0, %v1156
    %1158 = vdwg.mxu0
    %s1159 = scalar_lea.vmem %s5, 32
    %v1160 = vld [vmem:[%s1159] sm:$0xff]
    %v1161 = vld [vmem:[%s1159 + $0x8] sm:$0xff]
    %v1162 = vld [vmem:[%s1159 + $0x10] sm:$0xff]
    %v1163 = vld [vmem:[%s1159 + $0x18] sm:$0xff]
    %v1165 = vsel %vm122, %v1160, 0
    %v1168 = vsel %vm122, %v1161, 0
    %v1171 = vsel %vm122, %v1162, 0
    %v1174 = vsel %vm122, %v1163, 0
    %1176 = vmatpush.msra.mxu0 0.0
    %1177 = vmatpush.msra.mxu0 0.0
    %1178 = vmatpush.msra.mxu0 0.0
    %1179 = vmatpush.msra.mxu0 0.0
    %1180 = vmatpush.msra.mxu0 0.0
    %1181 = vmatpush.msra.mxu0 0.0
    %1182 = vmatpush.msra.mxu0 0.0
    %1183 = vmatpush.msra.mxu0 0.0
    %1184 = vmatpush.msra.mxu0 0.0
    %1185 = vmatpush.msra.mxu0 0.0
    %1186 = vmatpush.msra.mxu0 0.0
    %1187 = vmatpush.msra.mxu0 0.0
    %1188 = vmatpush.msra.mxu0 %v1157
    %1189 = vmatpush.msra.mxu0 %v1154
    %1190 = vmatpush.msra.mxu0 %v1151
    %1191 = vmatpush.msra.mxu0 %v1148
    %1192 = vmatmul.f32.gmra.mxu0 %v1165
    %v1193 = vpop.f32.mrf.mxu0
    %v1194 = vadd.f32 0.0, %v1193
    %1195 = vmatmul.f32.gmra.mxu0 %v1168
    %v1196 = vpop.f32.mrf.mxu0
    %v1197 = vadd.f32 0.0, %v1196
    %1198 = vmatmul.f32.gmra.mxu0 %v1171
    %v1199 = vpop.f32.mrf.mxu0
    %v1200 = vadd.f32 0.0, %v1199
    %1201 = vmatmul.f32.gmra.mxu0 %v1174
    %v1202 = vpop.f32.mrf.mxu0
    %v1203 = vadd.f32 0.0, %v1202
    %1204 = vdwg.mxu0
    %v1205 = vsel %vm312, %v1194, -inf
    %1206 = vmax.xlane.f32.xlu0 %v1205
    %v1207 = vpop.xlane.xlu0 %1206
    %v1208 = vsel %vm312, %v1197, -inf
    %1209 = vmax.xlane.f32.xlu0 %v1208
    %v1210 = vpop.xlane.xlu0 %1209
    %v1211 = vsel %vm312, %v1200, -inf
    %1212 = vmax.xlane.f32.xlu0 %v1211
    %v1213 = vpop.xlane.xlu0 %1212
    %v1214 = vsel %vm312, %v1203, -inf
    %1215 = vmax.xlane.f32.xlu0 %v1214
    %v1216 = vpop.xlane.xlu0 %1215
    %v1217 = vsub.f32 %v1194, %v1207
    %v1218 = vsub.f32 %v1197, %v1210
    %v1219 = vsub.f32 %v1200, %v1213
    %v1220 = vsub.f32 %v1203, %v1216
    %v1221 = vmul.f32 %v1217, 1.442695
    %v1222 = vpow.pop %v1221
    %v1223 = vmul.f32 %v1218, 1.442695
    %v1224 = vpow.pop %v1223
    %v1225 = vmul.f32 %v1219, 1.442695
    %v1226 = vpow.pop %v1225
    %v1227 = vmul.f32 %v1220, 1.442695
    %v1228 = vpow.pop %v1227
    %v1229 = vsel %vm312, %v1222, 0.0
    %1230 = vadd.xlane.f32.xlu0 %v1229
    %v1231 = vpop.xlane.xlu0 %1230
    %v1232 = vsel %vm312, %v1224, 0.0
    %1233 = vadd.xlane.f32.xlu0 %v1232
    %v1234 = vpop.xlane.xlu0 %1233
    %v1235 = vsel %vm312, %v1226, 0.0
    %1236 = vadd.xlane.f32.xlu0 %v1235
    %v1237 = vpop.xlane.xlu0 %1236
    %v1238 = vsel %vm312, %v1228, 0.0
    %1239 = vadd.xlane.f32.xlu0 %v1238
    %v1240 = vpop.xlane.xlu0 %1239
    %v1241 = vrcp.pop %v1231
    %v1242 = vmul.f32 %v1231, %v1241
    %v1243 = vsub.f32 1.0, %v1242
    %v1244 = vmul.f32 %v1241, %v1243
    %v1245 = vadd.f32 %v1241, %v1244
    %vm1246 = vweird.f32 %v1231
    %vm1247 = vweird.f32 %v1241
    %vm1248 = vmor %vm1246, %vm1247
    %v1249 = vsel %vm1248, %v1241, %v1245
    %v1250 = vand.u32 2147483647, %v1231
    %vm1251 = vcmp.eq.f32.partialorder %v1250, 8.507059e+37
    %v1252 = vand.u32 %v1231, 2147483648
    %v1253 = vor.u32 1.1754944e-38, %v1252
    %v1254 = vsel %vm1251, %v1253, %v1249
    %v1255 = vmul.f32 %v1222, %v1254
    %v1256 = vrcp.pop %v1234
    %v1257 = vmul.f32 %v1234, %v1256
    %v1258 = vsub.f32 1.0, %v1257
    %v1259 = vmul.f32 %v1256, %v1258
    %v1260 = vadd.f32 %v1256, %v1259
    %vm1261 = vweird.f32 %v1234
    %vm1262 = vweird.f32 %v1256
    %vm1263 = vmor %vm1261, %vm1262
    %v1264 = vsel %vm1263, %v1256, %v1260
    %v1265 = vand.u32 2147483647, %v1234
    %vm1266 = vcmp.eq.f32.partialorder %v1265, 8.507059e+37
    %v1267 = vand.u32 %v1234, 2147483648
    %v1268 = vor.u32 1.1754944e-38, %v1267
    %v1269 = vsel %vm1266, %v1268, %v1264
    %v1270 = vmul.f32 %v1224, %v1269
    %v1271 = vrcp.pop %v1237
    %v1272 = vmul.f32 %v1237, %v1271
    %v1273 = vsub.f32 1.0, %v1272
    %v1274 = vmul.f32 %v1271, %v1273
    %v1275 = vadd.f32 %v1271, %v1274
    %vm1276 = vweird.f32 %v1237
    %vm1277 = vweird.f32 %v1271
    %vm1278 = vmor %vm1276, %vm1277
    %v1279 = vsel %vm1278, %v1271, %v1275
    %v1280 = vand.u32 2147483647, %v1237
    %vm1281 = vcmp.eq.f32.partialorder %v1280, 8.507059e+37
    %v1282 = vand.u32 %v1237, 2147483648
    %v1283 = vor.u32 1.1754944e-38, %v1282
    %v1284 = vsel %vm1281, %v1283, %v1279
    %v1285 = vmul.f32 %v1226, %v1284
    %v1286 = vrcp.pop %v1240
    %v1287 = vmul.f32 %v1240, %v1286
    %v1288 = vsub.f32 1.0, %v1287
    %v1289 = vmul.f32 %v1286, %v1288
    %v1290 = vadd.f32 %v1286, %v1289
    %vm1291 = vweird.f32 %v1240
    %vm1292 = vweird.f32 %v1286
    %vm1293 = vmor %vm1291, %vm1292
    %v1294 = vsel %vm1293, %v1286, %v1290
    %v1295 = vand.u32 2147483647, %v1240
    %vm1296 = vcmp.eq.f32.partialorder %v1295, 8.507059e+37
    %v1297 = vand.u32 %v1240, 2147483648
    %v1298 = vor.u32 1.1754944e-38, %v1297
    %v1299 = vsel %vm1296, %v1298, %v1294
    %v1300 = vmul.f32 %v1228, %v1299
    %s1301 = scalar_lea.vmem %s6, 32
    %v1302 = vld [vmem:[%s1301] sm:$0xff]
    %v1303 = vld [vmem:[%s1301 + $0x8] sm:$0xff]
    %v1304 = vld [vmem:[%s1301 + $0x10] sm:$0xff]
    %v1305 = vld [vmem:[%s1301 + $0x18] sm:$0xff]
    %v1307 = vsel %vm122, %v1302, 0
    %v1310 = vsel %vm122, %v1303, 0
    %v1313 = vsel %vm122, %v1304, 0
    %v1316 = vsel %vm122, %v1305, 0
    %1318 = vmatpush.msra.mxu0 0.0
    %1319 = vmatpush.msra.mxu0 0.0
    %1320 = vmatpush.msra.mxu0 0.0
    %1321 = vmatpush.msra.mxu0 0.0
    %1322 = vmatpush.msra.mxu0 0.0
    %1323 = vmatpush.msra.mxu0 0.0
    %1324 = vmatpush.msra.mxu0 0.0
    %1325 = vmatpush.msra.mxu0 0.0
    %1326 = vmatpush.msra.mxu0 0.0
    %1327 = vmatpush.msra.mxu0 0.0
    %1328 = vmatpush.msra.mxu0 0.0
    %1329 = vmatpush.msra.mxu0 0.0
    %1330 = vmatpush.msra.mxu0 %v1300
    %1331 = vmatpush.msra.mxu0 %v1285
    %1332 = vmatpush.msra.mxu0 %v1270
    %1333 = vmatpush.msra.mxu0 %v1255
    %1334 = vmatmul.f32.gmra.mxu0 %v1307
    %v1335 = vpop.f32.mrf.mxu0
    %v1336 = vadd.f32 0.0, %v1335
    %1337 = vmatmul.f32.gmra.mxu0 %v1310
    %v1338 = vpop.f32.mrf.mxu0
    %v1339 = vadd.f32 0.0, %v1338
    %1340 = vmatmul.f32.gmra.mxu0 %v1313
    %v1341 = vpop.f32.mrf.mxu0
    %v1342 = vadd.f32 0.0, %v1341
    %1343 = vmatmul.f32.gmra.mxu0 %v1316
    %v1344 = vpop.f32.mrf.mxu0
    %v1345 = vadd.f32 0.0, %v1344
    %1346 = vdwg.mxu0
    %1347 = vrot.lane.b32.xlu0 %v1104, 64
    %v1348 = vpop.permute.xlu0 %1347
    %v1351 = vsel %vm312, %v1336, 0
    %v1354 = vsel %vm312, %v1339, 0
    %v1357 = vsel %vm312, %v1342, 0
    %v1360 = vsel %vm312, %v1345, 0
    %1362 = vmatpush.msra.mxu0 0.0
    %1363 = vmatpush.msra.mxu0 0.0
    %1364 = vmatpush.msra.mxu0 0.0
    %1365 = vmatpush.msra.mxu0 0.0
    %1366 = vmatpush.msra.mxu0 0.0
    %1367 = vmatpush.msra.mxu0 0.0
    %1368 = vmatpush.msra.mxu0 0.0
    %1369 = vmatpush.msra.mxu0 0.0
    %1370 = vmatpush.msra.mxu0 0.0
    %1371 = vmatpush.msra.mxu0 0.0
    %1372 = vmatpush.msra.mxu0 0.0
    %1373 = vmatpush.msra.mxu0 0.0
    %1374 = vmatpush.msra.mxu0 0.0
    %1375 = vmatpush.msra.mxu0 0.0
    %1376 = vmatpush.msra.mxu0 0.0
    %1377 = vmatpush.msra.mxu0 %v1348
    %1378 = vmatmul.f32.gmra.mxu0 %v1351
    %v1379 = vpop.f32.mrf.mxu0
    %v1380 = vadd.f32 0.0, %v1379
    %1381 = vmatmul.f32.gmra.mxu0 %v1354
    %v1382 = vpop.f32.mrf.mxu0
    %v1383 = vadd.f32 0.0, %v1382
    %1384 = vmatmul.f32.gmra.mxu0 %v1357
    %v1385 = vpop.f32.mrf.mxu0
    %v1386 = vadd.f32 0.0, %v1385
    %1387 = vmatmul.f32.gmra.mxu0 %v1360
    %v1388 = vpop.f32.mrf.mxu0
    %v1389 = vadd.f32 0.0, %v1388
    %1390 = vdwg.mxu0
    %v1391 = vmul.f32 %v1380, %v116
    %v1392 = vmul.f32 %v1383, %v117
    %v1393 = vmul.f32 %v1386, %v118
    %v1394 = vmul.f32 %v1389, %v119
    %v1395 = vadd.f32 %v1391, %v1392
    %v1396 = vadd.f32 %v1395, %v1393
    %v1397 = vadd.f32 %v1396, %v1394
    %v1398 = vmul.f32 %v1107, %v116
    %v1399 = vmul.f32 %v1107, %v117
    %v1400 = vmul.f32 %v1107, %v118
    %v1401 = vmul.f32 %v1107, %v119
    %1403 = vrot.lane.b32.xlu0 %v1107, 96
    %v1404 = vpop.permute.xlu0 %1403
    %v1406 = vsel %vm122, %v1398, 0
    %v1409 = vsel %vm122, %v1399, 0
    %v1412 = vsel %vm122, %v1400, 0
    %v1415 = vsel %vm122, %v1401, 0
    %v1417 = vsel %vm122, %v1404, 0
    %1419 = vmatpush.xpose.msra.mxu0 0.0
    %1420 = vmatpush.xpose.msra.mxu0 0.0
    %1421 = vmatpush.xpose.msra.mxu0 0.0
    %1422 = vmatpush.xpose.msra.mxu0 0.0
    %1423 = vmatpush.xpose.msra.mxu0 0.0
    %1424 = vmatpush.xpose.msra.mxu0 0.0
    %1425 = vmatpush.xpose.msra.mxu0 0.0
    %1426 = vmatpush.xpose.msra.mxu0 0.0
    %1427 = vmatpush.xpose.msra.mxu0 0.0
    %1428 = vmatpush.xpose.msra.mxu0 0.0
    %1429 = vmatpush.xpose.msra.mxu0 0.0
    %1430 = vmatpush.xpose.msra.mxu0 0.0
    %1431 = vmatpush.xpose.msra.mxu0 0.0
    %1432 = vmatpush.xpose.msra.mxu0 0.0
    %1433 = vmatpush.xpose.msra.mxu0 0.0
    %1434 = vmatpush.xpose.msra.mxu0 %v1417
    %1435 = vmatmul.f32.gmra.mxu0 %v1406
    %v1436 = vpop.f32.mrf.mxu0
    %v1437 = vadd.f32 0.0, %v1436
    %1438 = vmatmul.f32.gmra.mxu0 %v1409
    %v1439 = vpop.f32.mrf.mxu0
    %v1440 = vadd.f32 0.0, %v1439
    %1441 = vmatmul.f32.gmra.mxu0 %v1412
    %v1442 = vpop.f32.mrf.mxu0
    %v1443 = vadd.f32 0.0, %v1442
    %1444 = vmatmul.f32.gmra.mxu0 %v1415
    %v1445 = vpop.f32.mrf.mxu0
    %v1446 = vadd.f32 0.0, %v1445
    %1447 = vdwg.mxu0
    %1448 = vmatpush.msra.mxu0 0.0
    %1449 = vmatpush.msra.mxu0 0.0
    %1450 = vmatpush.msra.mxu0 0.0
    %1451 = vmatpush.msra.mxu0 0.0
    %1452 = vmatpush.msra.mxu0 0.0
    %1453 = vmatpush.msra.mxu0 0.0
    %1454 = vmatpush.msra.mxu0 0.0
    %1455 = vmatpush.msra.mxu0 0.0
    %1456 = vmatpush.msra.mxu0 0.0
    %1457 = vmatpush.msra.mxu0 0.0
    %1458 = vmatpush.msra.mxu0 0.0
    %1459 = vmatpush.msra.mxu0 0.0
    %1460 = vmatpush.msra.mxu0 %v1446
    %1461 = vmatpush.msra.mxu0 %v1443
    %1462 = vmatpush.msra.mxu0 %v1440
    %1463 = vmatpush.msra.mxu0 %v1437
    %1464 = vmatmul.f32.gmra.mxu0 %v1165
    %v1465 = vpop.f32.mrf.mxu0
    %v1466 = vadd.f32 0.0, %v1465
    %1467 = vmatmul.f32.gmra.mxu0 %v1168
    %v1468 = vpop.f32.mrf.mxu0
    %v1469 = vadd.f32 0.0, %v1468
    %1470 = vmatmul.f32.gmra.mxu0 %v1171
    %v1471 = vpop.f32.mrf.mxu0
    %v1472 = vadd.f32 0.0, %v1471
    %1473 = vmatmul.f32.gmra.mxu0 %v1174
    %v1474 = vpop.f32.mrf.mxu0
    %v1475 = vadd.f32 0.0, %v1474
    %1476 = vdwg.mxu0
    %v1477 = vsel %vm312, %v1466, -inf
    %1478 = vmax.xlane.f32.xlu0 %v1477
    %v1479 = vpop.xlane.xlu0 %1478
    %v1480 = vsel %vm312, %v1469, -inf
    %1481 = vmax.xlane.f32.xlu0 %v1480
    %v1482 = vpop.xlane.xlu0 %1481
    %v1483 = vsel %vm312, %v1472, -inf
    %1484 = vmax.xlane.f32.xlu0 %v1483
    %v1485 = vpop.xlane.xlu0 %1484
    %v1486 = vsel %vm312, %v1475, -inf
    %1487 = vmax.xlane.f32.xlu0 %v1486
    %v1488 = vpop.xlane.xlu0 %1487
    %v1489 = vsub.f32 %v1466, %v1479
    %v1490 = vsub.f32 %v1469, %v1482
    %v1491 = vsub.f32 %v1472, %v1485
    %v1492 = vsub.f32 %v1475, %v1488
    %v1493 = vmul.f32 %v1489, 1.442695
    %v1494 = vpow.pop %v1493
    %v1495 = vmul.f32 %v1490, 1.442695
    %v1496 = vpow.pop %v1495
    %v1497 = vmul.f32 %v1491, 1.442695
    %v1498 = vpow.pop %v1497
    %v1499 = vmul.f32 %v1492, 1.442695
    %v1500 = vpow.pop %v1499
    %v1501 = vsel %vm312, %v1494, 0.0
    %1502 = vadd.xlane.f32.xlu0 %v1501
    %v1503 = vpop.xlane.xlu0 %1502
    %v1504 = vsel %vm312, %v1496, 0.0
    %1505 = vadd.xlane.f32.xlu0 %v1504
    %v1506 = vpop.xlane.xlu0 %1505
    %v1507 = vsel %vm312, %v1498, 0.0
    %1508 = vadd.xlane.f32.xlu0 %v1507
    %v1509 = vpop.xlane.xlu0 %1508
    %v1510 = vsel %vm312, %v1500, 0.0
    %1511 = vadd.xlane.f32.xlu0 %v1510
    %v1512 = vpop.xlane.xlu0 %1511
    %v1513 = vrcp.pop %v1503
    %v1514 = vmul.f32 %v1503, %v1513
    %v1515 = vsub.f32 1.0, %v1514
    %v1516 = vmul.f32 %v1513, %v1515
    %v1517 = vadd.f32 %v1513, %v1516
    %vm1518 = vweird.f32 %v1503
    %vm1519 = vweird.f32 %v1513
    %vm1520 = vmor %vm1518, %vm1519
    %v1521 = vsel %vm1520, %v1513, %v1517
    %v1522 = vand.u32 2147483647, %v1503
    %vm1523 = vcmp.eq.f32.partialorder %v1522, 8.507059e+37
    %v1524 = vand.u32 %v1503, 2147483648
    %v1525 = vor.u32 1.1754944e-38, %v1524
    %v1526 = vsel %vm1523, %v1525, %v1521
    %v1527 = vmul.f32 %v1494, %v1526
    %v1528 = vrcp.pop %v1506
    %v1529 = vmul.f32 %v1506, %v1528
    %v1530 = vsub.f32 1.0, %v1529
    %v1531 = vmul.f32 %v1528, %v1530
    %v1532 = vadd.f32 %v1528, %v1531
    %vm1533 = vweird.f32 %v1506
    %vm1534 = vweird.f32 %v1528
    %vm1535 = vmor %vm1533, %vm1534
    %v1536 = vsel %vm1535, %v1528, %v1532
    %v1537 = vand.u32 2147483647, %v1506
    %vm1538 = vcmp.eq.f32.partialorder %v1537, 8.507059e+37
    %v1539 = vand.u32 %v1506, 2147483648
    %v1540 = vor.u32 1.1754944e-38, %v1539
    %v1541 = vsel %vm1538, %v1540, %v1536
    %v1542 = vmul.f32 %v1496, %v1541
    %v1543 = vrcp.pop %v1509
    %v1544 = vmul.f32 %v1509, %v1543
    %v1545 = vsub.f32 1.0, %v1544
    %v1546 = vmul.f32 %v1543, %v1545
    %v1547 = vadd.f32 %v1543, %v1546
    %vm1548 = vweird.f32 %v1509
    %vm1549 = vweird.f32 %v1543
    %vm1550 = vmor %vm1548, %vm1549
    %v1551 = vsel %vm1550, %v1543, %v1547
    %v1552 = vand.u32 2147483647, %v1509
    %vm1553 = vcmp.eq.f32.partialorder %v1552, 8.507059e+37
    %v1554 = vand.u32 %v1509, 2147483648
    %v1555 = vor.u32 1.1754944e-38, %v1554
    %v1556 = vsel %vm1553, %v1555, %v1551
    %v1557 = vmul.f32 %v1498, %v1556
    %v1558 = vrcp.pop %v1512
    %v1559 = vmul.f32 %v1512, %v1558
    %v1560 = vsub.f32 1.0, %v1559
    %v1561 = vmul.f32 %v1558, %v1560
    %v1562 = vadd.f32 %v1558, %v1561
    %vm1563 = vweird.f32 %v1512
    %vm1564 = vweird.f32 %v1558
    %vm1565 = vmor %vm1563, %vm1564
    %v1566 = vsel %vm1565, %v1558, %v1562
    %v1567 = vand.u32 2147483647, %v1512
    %vm1568 = vcmp.eq.f32.partialorder %v1567, 8.507059e+37
    %v1569 = vand.u32 %v1512, 2147483648
    %v1570 = vor.u32 1.1754944e-38, %v1569
    %v1571 = vsel %vm1568, %v1570, %v1566
    %v1572 = vmul.f32 %v1500, %v1571
    %1573 = vmatpush.msra.mxu0 0.0
    %1574 = vmatpush.msra.mxu0 0.0
    %1575 = vmatpush.msra.mxu0 0.0
    %1576 = vmatpush.msra.mxu0 0.0
    %1577 = vmatpush.msra.mxu0 0.0
    %1578 = vmatpush.msra.mxu0 0.0
    %1579 = vmatpush.msra.mxu0 0.0
    %1580 = vmatpush.msra.mxu0 0.0
    %1581 = vmatpush.msra.mxu0 0.0
    %1582 = vmatpush.msra.mxu0 0.0
    %1583 = vmatpush.msra.mxu0 0.0
    %1584 = vmatpush.msra.mxu0 0.0
    %1585 = vmatpush.msra.mxu0 %v1572
    %1586 = vmatpush.msra.mxu0 %v1557
    %1587 = vmatpush.msra.mxu0 %v1542
    %1588 = vmatpush.msra.mxu0 %v1527
    %1589 = vmatmul.f32.gmra.mxu0 %v1307
    %v1590 = vpop.f32.mrf.mxu0
    %v1591 = vadd.f32 0.0, %v1590
    %1592 = vmatmul.f32.gmra.mxu0 %v1310
    %v1593 = vpop.f32.mrf.mxu0
    %v1594 = vadd.f32 0.0, %v1593
    %1595 = vmatmul.f32.gmra.mxu0 %v1313
    %v1596 = vpop.f32.mrf.mxu0
    %v1597 = vadd.f32 0.0, %v1596
    %1598 = vmatmul.f32.gmra.mxu0 %v1316
    %v1599 = vpop.f32.mrf.mxu0
    %v1600 = vadd.f32 0.0, %v1599
    %1601 = vdwg.mxu0
    %1602 = vrot.lane.b32.xlu0 %v1107, 64
    %v1603 = vpop.permute.xlu0 %1602
    %v1606 = vsel %vm312, %v1591, 0
    %v1609 = vsel %vm312, %v1594, 0
    %v1612 = vsel %vm312, %v1597, 0
    %v1615 = vsel %vm312, %v1600, 0
    %1617 = vmatpush.msra.mxu0 0.0
    %1618 = vmatpush.msra.mxu0 0.0
    %1619 = vmatpush.msra.mxu0 0.0
    %1620 = vmatpush.msra.mxu0 0.0
    %1621 = vmatpush.msra.mxu0 0.0
    %1622 = vmatpush.msra.mxu0 0.0
    %1623 = vmatpush.msra.mxu0 0.0
    %1624 = vmatpush.msra.mxu0 0.0
    %1625 = vmatpush.msra.mxu0 0.0
    %1626 = vmatpush.msra.mxu0 0.0
    %1627 = vmatpush.msra.mxu0 0.0
    %1628 = vmatpush.msra.mxu0 0.0
    %1629 = vmatpush.msra.mxu0 0.0
    %1630 = vmatpush.msra.mxu0 0.0
    %1631 = vmatpush.msra.mxu0 0.0
    %1632 = vmatpush.msra.mxu0 %v1603
    %1633 = vmatmul.f32.gmra.mxu0 %v1606
    %v1634 = vpop.f32.mrf.mxu0
    %v1635 = vadd.f32 0.0, %v1634
    %1636 = vmatmul.f32.gmra.mxu0 %v1609
    %v1637 = vpop.f32.mrf.mxu0
    %v1638 = vadd.f32 0.0, %v1637
    %1639 = vmatmul.f32.gmra.mxu0 %v1612
    %v1640 = vpop.f32.mrf.mxu0
    %v1641 = vadd.f32 0.0, %v1640
    %1642 = vmatmul.f32.gmra.mxu0 %v1615
    %v1643 = vpop.f32.mrf.mxu0
    %v1644 = vadd.f32 0.0, %v1643
    %1645 = vdwg.mxu0
    %v1646 = vmul.f32 %v1635, %v116
    %v1647 = vmul.f32 %v1638, %v117
    %v1648 = vmul.f32 %v1641, %v118
    %v1649 = vmul.f32 %v1644, %v119
    %v1650 = vadd.f32 %v1646, %v1647
    %v1651 = vadd.f32 %v1650, %v1648
    %v1652 = vadd.f32 %v1651, %v1649
    %s1653 = scalar_lea.vmem %s7, 32
    %v1654 = vld [vmem:[%s1653] sm:$0xff]
    %v1655 = vld [vmem:[%s1653 + $0x8] sm:$0xff]
    %v1656 = vld [vmem:[%s1653 + $0x10] sm:$0xff]
    %v1657 = vld [vmem:[%s1653 + $0x18] sm:$0xff]
    %s1658 = scalar_lea.vmem %s8, 1
    %v1659 = vld [vmem:[%s1658] sm:$0x1]
    %v1661 = vperm.slane %v1659, 0
    %v1664 = vsel %vm122, %v1397, 0
    %v1667 = vsel %vm122, %v1652, 0
    %1669 = vmatpush.msra.mxu0 0.0
    %1670 = vmatpush.msra.mxu0 0.0
    %1671 = vmatpush.msra.mxu0 0.0
    %1672 = vmatpush.msra.mxu0 0.0
    %1673 = vmatpush.msra.mxu0 0.0
    %1674 = vmatpush.msra.mxu0 0.0
    %1675 = vmatpush.msra.mxu0 0.0
    %1676 = vmatpush.msra.mxu0 0.0
    %1677 = vmatpush.msra.mxu0 0.0
    %1678 = vmatpush.msra.mxu0 0.0
    %1679 = vmatpush.msra.mxu0 0.0
    %1680 = vmatpush.msra.mxu0 0.0
    %1681 = vmatpush.msra.mxu0 %v1657
    %1682 = vmatpush.msra.mxu0 %v1656
    %1683 = vmatpush.msra.mxu0 %v1655
    %1684 = vmatpush.msra.mxu0 %v1654
    %1685 = vmatmul.f32.gmra.mxu0 %v1664
    %v1686 = vpop.f32.mrf.mxu0
    %v1687 = vadd.f32 %v1661, %v1686
    %1688 = vmatmul.f32.gmra.mxu0 %v1667
    %v1689 = vpop.f32.mrf.mxu0
    %v1690 = vadd.f32 %v1661, %v1689
    %1691 = vdwg.mxu0
    %v1692 = vadd.f32 %v1687, %v1015
    %v1693 = vadd.f32 %v1690, %v1016
    %s1694 = scalar_lea.vmem %s9, 1
    %v1695 = vld [vmem:[%s1694] sm:$0x1]
    %s1696 = scalar_lea.vmem %s10, 1
    %v1697 = vld [vmem:[%s1696] sm:$0x1]
    %v1698 = vsel %vm122, %v1692, 0.0
    %1699 = vadd.xlane.f32.xlu0 %v1698
    %v1700 = vpop.xlane.xlu0 %1699
    %v1701 = vsel %vm122, %v1693, 0.0
    %1702 = vadd.xlane.f32.xlu0 %v1701
    %v1703 = vpop.xlane.xlu0 %1702
    %v1704 = vmul.f32 %v1700, %v135
    %v1705 = vmul.f32 %v1703, %v135
    %v1706 = vsub.f32 %v1692, %v1704
    %v1707 = vsub.f32 %v1693, %v1705
    %v1708 = vmul.f32 %v1706, %v1706
    %v1709 = vmul.f32 %v1707, %v1707
    %v1710 = vsel %vm122, %v1708, 0.0
    %1711 = vadd.xlane.f32.xlu0 %v1710
    %v1712 = vpop.xlane.xlu0 %1711
    %v1713 = vsel %vm122, %v1709, 0.0
    %1714 = vadd.xlane.f32.xlu0 %v1713
    %v1715 = vpop.xlane.xlu0 %1714
    %v1716 = vmul.f32 %v1712, %v135
    %v1717 = vmul.f32 %v1715, %v135
    %v1718 = vadd.f32 %v1716, 1e-05
    %v1719 = vadd.f32 %v1717, 1e-05
    %v1720 = vrsqrt.pop %v1718
    %v1721 = vmul.f32 %v1720, %v1718
    %v1722 = vmul.f32 %v1721, %v1720
    %v1723 = vmul.f32 0.5, %v1722
    %v1724 = vsub.f32 1.5, %v1723
    %v1725 = vmul.f32 %v1720, %v1724
    %vm1726 = vweird.f32 %v1718
    %vm1727 = vweird.f32 %v1720
    %vm1728 = vmor %vm1726, %vm1727
    %v1729 = vsel %vm1728, %v1720, %v1725
    %v1730 = vrsqrt.pop %v1719
    %v1731 = vmul.f32 %v1730, %v1719
    %v1732 = vmul.f32 %v1731, %v1730
    %v1733 = vmul.f32 0.5, %v1732
    %v1734 = vsub.f32 1.5, %v1733
    %v1735 = vmul.f32 %v1730, %v1734
    %vm1736 = vweird.f32 %v1719
    %vm1737 = vweird.f32 %v1730
    %vm1738 = vmor %vm1736, %vm1737
    %v1739 = vsel %vm1738, %v1730, %v1735
    %v1740 = vmul.f32 %v1706, %v1729
    %v1741 = vmul.f32 %v1707, %v1739
    %v1743 = vperm.slane %v1695, 0
    %v1745 = vmul.f32 %v1740, %v1743
    %v1746 = vmul.f32 %v1741, %v1743
    %v1748 = vperm.slane %v1697, 0
    %v1750 = vadd.f32 %v1745, %v1748
    %v1751 = vadd.f32 %v1746, %v1748
    %s1752 = scalar_lea.vmem %s11, 32
    %v1753 = vld [vmem:[%s1752] sm:$0xff]
    %v1754 = vld [vmem:[%s1752 + $0x8] sm:$0xff]
    %v1755 = vld [vmem:[%s1752 + $0x10] sm:$0xff]
    %v1756 = vld [vmem:[%s1752 + $0x18] sm:$0xff]
    %s1757 = scalar_lea.vmem %s12, 1
    %v1758 = vld [vmem:[%s1757] sm:$0x1]
    %v1760 = vperm.slane %v1758, 0
    %v1763 = vsel %vm122, %v1750, 0
    %v1766 = vsel %vm122, %v1751, 0
    %1768 = vmatpush.msra.mxu0 0.0
    %1769 = vmatpush.msra.mxu0 0.0
    %1770 = vmatpush.msra.mxu0 0.0
    %1771 = vmatpush.msra.mxu0 0.0
    %1772 = vmatpush.msra.mxu0 0.0
    %1773 = vmatpush.msra.mxu0 0.0
    %1774 = vmatpush.msra.mxu0 0.0
    %1775 = vmatpush.msra.mxu0 0.0
    %1776 = vmatpush.msra.mxu0 0.0
    %1777 = vmatpush.msra.mxu0 0.0
    %1778 = vmatpush.msra.mxu0 0.0
    %1779 = vmatpush.msra.mxu0 0.0
    %1780 = vmatpush.msra.mxu0 %v1756
    %1781 = vmatpush.msra.mxu0 %v1755
    %1782 = vmatpush.msra.mxu0 %v1754
    %1783 = vmatpush.msra.mxu0 %v1753
    %1784 = vmatmul.f32.gmra.mxu0 %v1763
    %v1785 = vpop.f32.mrf.mxu0
    %v1786 = vadd.f32 %v1760, %v1785
    %1787 = vmatmul.f32.gmra.mxu0 %v1766
    %v1788 = vpop.f32.mrf.mxu0
    %v1789 = vadd.f32 %v1760, %v1788
    %1790 = vdwg.mxu0
    %v1791 = vmul.f32 %v1786, 0.5
    %v1792 = vmul.f32 %v1789, 0.5
    %v1793 = vmul.f32 %v1786, 0.70710677
    %v1794 = vmul.f32 %v1789, 0.70710677
    %v1795 = vand.u32 2147483647, %v1793
    %v1796 = vand.u32 2147483647, %v1794
    %v1797 = vmul.f32 %v1795, 0.3275911
    %v1798 = vmul.f32 %v1796, 0.3275911
    %v1799 = vadd.f32 %v1797, 1.0
    %v1800 = vadd.f32 %v1798, 1.0
    %v1801 = vrcp.pop %v1799
    %v1802 = vmul.f32 %v1799, %v1801
    %v1803 = vsub.f32 1.0, %v1802
    %v1804 = vmul.f32 %v1801, %v1803
    %v1805 = vadd.f32 %v1801, %v1804
    %vm1806 = vweird.f32 %v1799
    %vm1807 = vweird.f32 %v1801
    %vm1808 = vmor %vm1806, %vm1807
    %v1809 = vsel %vm1808, %v1801, %v1805
    %v1810 = vand.u32 2147483647, %v1799
    %vm1811 = vcmp.eq.f32.partialorder %v1810, 8.507059e+37
    %v1812 = vand.u32 %v1799, 2147483648
    %v1813 = vor.u32 1.1754944e-38, %v1812
    %v1814 = vsel %vm1811, %v1813, %v1809
    %v1815 = vmul.f32 1.0, %v1814
    %v1816 = vrcp.pop %v1800
    %v1817 = vmul.f32 %v1800, %v1816
    %v1818 = vsub.f32 1.0, %v1817
    %v1819 = vmul.f32 %v1816, %v1818
    %v1820 = vadd.f32 %v1816, %v1819
    %vm1821 = vweird.f32 %v1800
    %vm1822 = vweird.f32 %v1816
    %vm1823 = vmor %vm1821, %vm1822
    %v1824 = vsel %vm1823, %v1816, %v1820
    %v1825 = vand.u32 2147483647, %v1800
    %vm1826 = vcmp.eq.f32.partialorder %v1825, 8.507059e+37
    %v1827 = vand.u32 %v1800, 2147483648
    %v1828 = vor.u32 1.1754944e-38, %v1827
    %v1829 = vsel %vm1826, %v1828, %v1824
    %v1830 = vmul.f32 1.0, %v1829
    %v1831 = vmul.f32 %v1815, 1.0614054
    %v1832 = vmul.f32 %v1830, 1.0614054
    %v1833 = vadd.f32 %v1831, -1.4531521
    %v1834 = vadd.f32 %v1832, -1.4531521
    %v1835 = vmul.f32 %v1833, %v1815
    %v1836 = vmul.f32 %v1834, %v1830
    %v1837 = vadd.f32 %v1835, 1.4214138
    %v1838 = vadd.f32 %v1836, 1.4214138
    %v1839 = vmul.f32 %v1837, %v1815
    %v1840 = vmul.f32 %v1838, %v1830
    %v1841 = vadd.f32 %v1839, -0.28449672
    %v1842 = vadd.f32 %v1840, -0.28449672
    %v1843 = vmul.f32 %v1841, %v1815
    %v1844 = vmul.f32 %v1842, %v1830
    %v1845 = vadd.f32 %v1843, 0.2548296
    %v1846 = vadd.f32 %v1844, 0.2548296
    %v1847 = vmul.f32 %v1845, %v1815
    %v1848 = vmul.f32 %v1846, %v1830
    %v1849 = vsub.f32 0.0, %v1795
    %v1850 = vsub.f32 0.0, %v1796
    %v1851 = vmul.f32 %v1849, %v1795
    %v1852 = vmul.f32 %v1850, %v1796
    %v1853 = vmul.f32 %v1851, 1.442695
    %v1854 = vpow.pop %v1853
    %v1855 = vmul.f32 %v1852, 1.442695
    %v1856 = vpow.pop %v1855
    %v1857 = vmul.f32 %v1847, %v1854
    %v1858 = vmul.f32 %v1848, %v1856
    %v1859 = vsub.f32 1.0, %v1857
    %v1860 = vsub.f32 1.0, %v1858
    %vm1861 = vcmp.ge.f32.partialorder %v1793, 0.0
    %vm1862 = vcmp.ge.f32.partialorder %v1794, 0.0
    %v1863 = vsub.f32 0.0, %v1859
    %v1864 = vsub.f32 0.0, %v1860
    %v1865 = vsel %vm1861, %v1859, %v1863
    %v1866 = vsel %vm1862, %v1860, %v1864
    %v1867 = vadd.f32 %v1865, 1.0
    %v1868 = vadd.f32 %v1866, 1.0
    %v1869 = vmul.f32 %v1791, %v1867
    %v1870 = vmul.f32 %v1792, %v1868
    %s1871 = scalar_lea.vmem %s13, 128
    %v1872 = vld [vmem:[%s1871] sm:$0xff]
    %v1873 = vld [vmem:[%s1871 + $0x8] sm:$0xff]
    %v1874 = vld [vmem:[%s1871 + $0x10] sm:$0xff]
    %v1875 = vld [vmem:[%s1871 + $0x18] sm:$0xff]
    %v1876 = vld [vmem:[%s1871 + $0x20] sm:$0xff]
    %v1877 = vld [vmem:[%s1871 + $0x28] sm:$0xff]
    %v1878 = vld [vmem:[%s1871 + $0x30] sm:$0xff]
    %v1879 = vld [vmem:[%s1871 + $0x38] sm:$0xff]
    %v1880 = vld [vmem:[%s1871 + $0x40] sm:$0xff]
    %v1881 = vld [vmem:[%s1871 + $0x48] sm:$0xff]
    %v1882 = vld [vmem:[%s1871 + $0x50] sm:$0xff]
    %v1883 = vld [vmem:[%s1871 + $0x58] sm:$0xff]
    %v1884 = vld [vmem:[%s1871 + $0x60] sm:$0xff]
    %v1885 = vld [vmem:[%s1871 + $0x68] sm:$0xff]
    %v1886 = vld [vmem:[%s1871 + $0x70] sm:$0xff]
    %v1887 = vld [vmem:[%s1871 + $0x78] sm:$0xff]
    %s1888 = scalar_lea.vmem %s14, 1
    %v1889 = vld [vmem:[%s1888] sm:$0x1]
    %v1891 = vperm.slane %v1889, 0
    %1893 = vmatpush.msra.mxu0 %v1887
    %1894 = vmatpush.msra.mxu0 %v1886
    %1895 = vmatpush.msra.mxu0 %v1885
    %1896 = vmatpush.msra.mxu0 %v1884
    %1897 = vmatpush.msra.mxu0 %v1883
    %1898 = vmatpush.msra.mxu0 %v1882
    %1899 = vmatpush.msra.mxu0 %v1881
    %1900 = vmatpush.msra.mxu0 %v1880
    %1901 = vmatpush.msra.mxu0 %v1879
    %1902 = vmatpush.msra.mxu0 %v1878
    %1903 = vmatpush.msra.mxu0 %v1877
    %1904 = vmatpush.msra.mxu0 %v1876
    %1905 = vmatpush.msra.mxu0 %v1875
    %1906 = vmatpush.msra.mxu0 %v1874
    %1907 = vmatpush.msra.mxu0 %v1873
    %1908 = vmatpush.msra.mxu0 %v1872
    %1909 = vmatmul.f32.gmra.mxu0 %v1869
    %v1910 = vpop.f32.mrf.mxu0
    %v1911 = vadd.f32 %v1891, %v1910
    %1912 = vmatmul.f32.gmra.mxu0 %v1870
    %v1913 = vpop.f32.mrf.mxu0
    %v1914 = vadd.f32 %v1891, %v1913
    %1915 = vdwg.mxu0
    %v1916 = vadd.f32 %v1911, %v1692
    %v1917 = vadd.f32 %v1914, %v1693
    %1918 = vst.msk [vmem:[#allocation10] sm:$0xff] %vm122, %v1916
    %1919 = vst.msk [vmem:[#allocation10 + $0x8] sm:$0xff] %vm122, %v1917
    // Predicated region
    $region78: #{tpu_custom_call.1} parent=1 // pred_check
      _
    $region79: #{tpu_custom_call.1} parent=1 // pred_check_branch
      %1921 = sbr.rel (0) target = $region81
    $region80: #{tpu_custom_call.1} parent=1 // pred_region
      %1923 = vsyncadd [#allocation4], 0
      %s1924 = sshll.u32 [#allocation10], 4
      %s1925 = int_to_ptr.vmem [resolvable:$true] %s1924
      %s1926 = sshll.u32 %s15, 4
      %s1927 = int_to_ptr.hbm [resolvable:$true] %s1926
      %1932 = dma.vmem_to_hbm [thread:$0]  %s1925, 256, %s1927, [#allocation4], 128, 128, 8
    $region81: #{tpu_custom_call.1} parent=1 // pred_fallthru
      _
    // Predicated region
    $region82: #{tpu_custom_call.1} parent=1 // pred_check
      _
    $region83: #{tpu_custom_call.1} parent=1 // pred_check_branch
      %1934 = sbr.rel (0) target = $region85
    $region84: #{tpu_custom_call.1} parent=1 // pred_region
      %1936 = dma.done [#allocation4], 256
    $region85: #{tpu_custom_call.1} parent=1 // pred_fallthru
      _
    %1937 = vsyncpa [#allocation3], 1
    %1938 = vsyncpa [#allocation6], 1
    %1939 = vsyncpa [#allocation9], 1
    %1940 = vsyncpa [#allocation4], 1

</llo_original>
